<compile_context>
chip_gen: v7x
topology: tpu7x:2x2x1
jax: 0.10.0
libtpu: 0.0.40
codegen_flags: <defaults>
</compile_context>

<pallas_src>
import functools
import math

import jax
import jax.numpy as jnp
import numpy as np
from jax.experimental import pallas as pl
from jax.experimental.pallas import tpu as pltpu

EPS = 1e-7


def _bbox_loss_kernel(pd_ref, pb_ref, tb_ref, ap_ref, w_ref, v_ref,
                      liou_ref, ldfl_ref, *, reg_max):
    step = pl.program_id(0)

    @pl.when(step == 0)
    def _init():
        liou_ref[...] = jnp.zeros_like(liou_ref)
        ldfl_ref[...] = jnp.zeros_like(ldfl_ref)

    pb = pb_ref[...].astype(jnp.float32)     # (4, TM)  predicted xyxy, rows = x1,y1,x2,y2
    tb = tb_ref[...].astype(jnp.float32)     # (4, TM)  target xyxy
    ap = ap_ref[...].astype(jnp.float32)     # (2, TM)  anchor points, rows = x,y
    w = w_ref[...]                           # (1, TM)  fg-masked weight = sum(target_scores)
    v = v_ref[...]                           # (1, TM)  (4/pi^2)*(atan_t - atan_p)^2

    # ---- CIoU (bbox_iou, xywh=False, CIoU=True) ----
    b1x1, b1y1, b1x2, b1y2 = pb[0:1], pb[1:2], pb[2:3], pb[3:4]
    b2x1, b2y1, b2x2, b2y2 = tb[0:1], tb[1:2], tb[2:3], tb[3:4]
    w1 = b1x2 - b1x1
    h1 = b1y2 - b1y1 + EPS
    w2 = b2x2 - b2x1
    h2 = b2y2 - b2y1 + EPS

    inter = (jnp.maximum(jnp.minimum(b1x2, b2x2) - jnp.maximum(b1x1, b2x1), 0.0)
             * jnp.maximum(jnp.minimum(b1y2, b2y2) - jnp.maximum(b1y1, b2y1), 0.0))
    union = w1 * h1 + w2 * h2 - inter + EPS
    iou = inter / union

    cw = jnp.maximum(b1x2, b2x2) - jnp.minimum(b1x1, b2x1)
    ch = jnp.maximum(b1y2, b2y2) - jnp.minimum(b1y1, b2y1)
    c2 = cw * cw + ch * ch + EPS
    rho2 = ((b2x1 + b2x2 - b1x1 - b1x2) ** 2
            + (b2y1 + b2y2 - b1y1 - b1y2) ** 2) * 0.25
    alpha = v / (v - iou + (1.0 + EPS))
    ciou = iou - (rho2 / c2 + v * alpha)

    # masked-select replaced by mask-folded weight (w == 0 outside fg / padding)
    liou_terms = jnp.where(w > 0.0, (1.0 - ciou) * w, 0.0)               # (1, TM)

    # ---- DFL (bbox2dist + DFLoss), all 4 sides batched ----
    ltrb = jnp.concatenate([ap - tb[0:2], tb[2:4] - ap], axis=0)         # (4, TM) = l,t,r,b
    t = jnp.clip(ltrb, 0.0, reg_max - 1 - 0.01)
    tl = jnp.floor(t)
    wl = tl + 1.0 - t
    wr = 1.0 - wl
    tl_i = tl.astype(jnp.int32)                                          # (4, TM)

    logits = pd_ref[...].astype(jnp.float32)                             # (4, R, TM)
    m = jnp.max(logits, axis=1)                                          # (4, TM)
    e = jnp.exp(logits - m[:, None, :])
    lse = m + jnp.log(jnp.sum(e, axis=1))                                # (4, TM)

    idx = jax.lax.broadcasted_iota(jnp.int32, logits.shape, 1)           # (4, R, TM)
    logit_l = jnp.sum(jnp.where(idx == tl_i[:, None, :], logits, 0.0), axis=1)        # (4, TM)
    logit_r = jnp.sum(jnp.where(idx == (tl_i[:, None, :] + 1), logits, 0.0), axis=1)  # (4, TM)

    dfl = (lse - logit_l) * wl + (lse - logit_r) * wr                    # (4, TM)
    dfl_mean = jnp.sum(dfl, axis=0, keepdims=True) * 0.25                # (1, TM) mean over sides
    ldfl_terms = jnp.where(w > 0.0, dfl_mean * w, 0.0)                   # (1, TM)

    liou_ref[...] += jnp.sum(liou_terms, axis=-1, keepdims=True)
    ldfl_ref[...] += jnp.sum(ldfl_terms, axis=-1, keepdims=True)


def bbox_loss(pred_dist, pred_bboxes, anchor_points, target_bboxes,
              target_scores, target_scores_sum, fg_mask, reg_max=16,
              block_m=1024):
    """JAX/Pallas equivalent of BboxLoss.forward (reg_max > 1 path)."""
    assert block_m % 128 == 0
    B, N, _ = pred_bboxes.shape
    M = B * N
    R = reg_max
    M_pad = pl.cdiv(M, block_m) * block_m
    pad = M_pad - M

    pb = pred_bboxes.reshape(M, 4).astype(jnp.float32)
    tb = target_bboxes.reshape(M, 4).astype(jnp.float32)
    ap = jnp.broadcast_to(anchor_points[None], (B, N, 2)).reshape(M, 2).astype(jnp.float32)

    # weight = target_scores.sum(-1), with the fg mask folded in (no (M, C) stream in-kernel)
    weight = (target_scores.astype(jnp.float32).sum(-1)
              * fg_mask.reshape(B, N).astype(jnp.float32)).reshape(1, M)

    # TODO(synk): lax.atan has no guaranteed Mosaic TPU lowering; the CIoU aspect-ratio term
    # v = (4/pi^2)*(atan(w2/h2) - atan(w1/h1))^2 is computed here and streamed as (1, M).
    w1 = pb[:, 2] - pb[:, 0]
    h1 = pb[:, 3] - pb[:, 1] + EPS
    w2 = tb[:, 2] - tb[:, 0]
    h2 = tb[:, 3] - tb[:, 1] + EPS
    v = ((4.0 / math.pi ** 2)
         * (jnp.arctan(w2 / h2) - jnp.arctan(w1 / h1)) ** 2).reshape(1, M)

    # lane-dense transposes: anchor axis M on the 128-lane (last) dimension
    pd = pred_dist.reshape(M, 4, R).transpose(1, 2, 0)       # (4, R, M), caller dtype (bf16 ok)
    pb_t = pb.T                                              # (4, M)
    tb_t = tb.T                                              # (4, M)
    ap_t = ap.T                                              # (2, M)

    def pad_m(x):
        return jnp.pad(x, [(0, 0)] * (x.ndim - 1) + [(0, pad)])

    pd, pb_t, tb_t, ap_t, weight, v = map(pad_m, (pd, pb_t, tb_t, ap_t, weight, v))

    grid = (M_pad // block_m,)
    liou, ldfl = pl.pallas_call(
        functools.partial(_bbox_loss_kernel, reg_max=R),
        grid=grid,
        in_specs=[
            pl.BlockSpec((4, R, block_m), lambda i: (0, 0, i)),
            pl.BlockSpec((4, block_m), lambda i: (0, i)),
            pl.BlockSpec((4, block_m), lambda i: (0, i)),
            pl.BlockSpec((2, block_m), lambda i: (0, i)),
            pl.BlockSpec((1, block_m), lambda i: (0, i)),
            pl.BlockSpec((1, block_m), lambda i: (0, i)),
        ],
        out_specs=(
            pl.BlockSpec((1, 1), lambda i: (0, 0)),
            pl.BlockSpec((1, 1), lambda i: (0, 0)),
        ),
        out_shape=(jax.ShapeDtypeStruct((1, 1), jnp.float32),
                   jax.ShapeDtypeStruct((1, 1), jnp.float32)),
        compiler_params=pltpu.CompilerParams(
            dimension_semantics=("arbitrary",)),
    )(pd, pb_t, tb_t, ap_t, weight, v)

    tss = jnp.asarray(target_scores_sum, jnp.float32)
    return liou[0, 0] / tss, ldfl[0, 0] / tss


def reference(pred_dist, pred_bboxes, anchor_points, target_bboxes,
              target_scores, target_scores_sum, fg_mask, reg_max=16):
    """Pure NumPy reference mirroring the PyTorch module (with real masked-select)."""
    eps = 1e-7
    fg = np.asarray(fg_mask)
    ts = np.asarray(target_scores, np.float32)
    weight = ts.sum(-1)[fg][:, None]
    pb = np.asarray(pred_bboxes, np.float32)[fg]
    tb = np.asarray(target_bboxes, np.float32)[fg]

    b1x1, b1y1, b1x2, b1y2 = [pb[:, i:i + 1] for i in range(4)]
    b2x1, b2y1, b2x2, b2y2 = [tb[:, i:i + 1] for i in range(4)]
    w1, h1 = b1x2 - b1x1, b1y2 - b1y1 + eps
    w2, h2 = b2x2 - b2x1, b2y2 - b2y1 + eps
    inter = np.clip(np.minimum(b1x2, b2x2) - np.maximum(b1x1, b2x1), 0, None) * \
            np.clip(np.minimum(b1y2, b2y2) - np.maximum(b1y1, b2y1), 0, None)
    union = w1 * h1 + w2 * h2 - inter + eps
    iou = inter / union
    cw = np.maximum(b1x2, b2x2) - np.minimum(b1x1, b2x1)
    ch = np.maximum(b1y2, b2y2) - np.minimum(b1y1, b2y1)
    c2 = cw ** 2 + ch ** 2 + eps
    rho2 = ((b2x1 + b2x2 - b1x1 - b1x2) ** 2 + (b2y1 + b2y2 - b1y1 - b1y2) ** 2) / 4.0
    v = (4.0 / math.pi ** 2) * (np.arctan(w2 / h2) - np.arctan(w1 / h1)) ** 2
    alpha = v / (v - iou + (1.0 + eps))
    ciou = iou - (rho2 / c2 + v * alpha)
    tss = float(target_scores_sum)
    loss_iou = ((1.0 - ciou) * weight).sum() / tss

    tbd = np.asarray(target_bboxes, np.float32)
    ap = np.broadcast_to(np.asarray(anchor_points, np.float32)[None], tbd.shape[:2] + (2,))
    ltrb = np.concatenate([ap - tbd[..., :2], tbd[..., 2:] - ap], -1)
    ltrb = np.clip(ltrb, 0.0, reg_max - 1 - 0.01)
    t = ltrb[fg]                                           # (nfg, 4)
    pd = np.asarray(pred_dist, np.float32)[fg].reshape(-1, reg_max)
    tl = np.floor(t).astype(np.int64)
    tr = tl + 1
    wl = tr - t
    wr = 1.0 - wl
    m = pd.max(-1, keepdims=True)
    lse = (m + np.log(np.exp(pd - m).sum(-1, keepdims=True)))[:, 0]
    rows = np.arange(pd.shape[0])
    ce_l = (lse - pd[rows, tl.reshape(-1)]).reshape(tl.shape)
    ce_r = (lse - pd[rows, tr.reshape(-1)]).reshape(tl.shape)
    dfl = (ce_l * wl + ce_r * wr).mean(-1, keepdims=True)
    loss_dfl = (dfl * weight).sum() / tss
    return float(loss_iou), float(loss_dfl)


if __name__ == "__main__":
    key = jax.random.PRNGKey(0)
    B, N, C, R = 2, 8, 8, 16   # batch, anchors, classes, reg_max
    ks = jax.random.split(key, 6)

    anchor_points = jax.random.uniform(ks[0], (N, 2), jnp.float32, 2.0, 30.0)
    ap_b = jnp.broadcast_to(anchor_points[None], (B, N, 2))
    t_off = jax.random.uniform(ks[1], (B, N, 4), jnp.float32, 0.5, 12.0)
    target_bboxes = jnp.concatenate([ap_b - t_off[..., :2], ap_b + t_off[..., 2:]], -1)
    p_off = jax.random.uniform(ks[2], (B, N, 4), jnp.float32, 0.5, 12.0)
    pred_bboxes = jnp.concatenate([ap_b - p_off[..., :2], ap_b + p_off[..., 2:]], -1)
    pred_dist = jax.random.normal(ks[3], (B, N, 4 * R), jnp.float32)
    target_scores = jax.random.uniform(ks[4], (B, N, C), jnp.float32)
    fg_mask = jax.random.bernoulli(ks[5], 0.6, (B, N))
    fg_mask = fg_mask.at[0, 0].set(True)   # ensure at least one foreground anchor
    target_scores_sum = jnp.maximum(target_scores.sum(), 1.0)

    liou, ldfl = bbox_loss(pred_dist, pred_bboxes, anchor_points, target_bboxes,
                           target_scores, target_scores_sum, fg_mask, reg_max=R)
    jax.block_until_ready((liou, ldfl))

    ref_iou, ref_dfl = reference(pred_dist, pred_bboxes, anchor_points, target_bboxes,
                                 target_scores, target_scores_sum, fg_mask, reg_max=R)
    np.testing.assert_allclose(float(liou), ref_iou, rtol=1e-3, atol=1e-4)
    np.testing.assert_allclose(float(ldfl), ref_dfl, rtol=1e-3, atol=1e-4)
    print("KERNEL_OK")
</pallas_src>

<mosaic_0001>
module attributes {stable_mosaic.version = 11 : i64} {
  func.func @_bbox_loss_kernel(%arg0: i32, %arg1: memref<4x16x1024xf32, #tpu.memory_space<vmem>>, %arg2: memref<4x1024xf32, #tpu.memory_space<vmem>>, %arg3: memref<4x1024xf32, #tpu.memory_space<vmem>>, %arg4: memref<2x1024xf32, #tpu.memory_space<vmem>>, %arg5: memref<1x1024xf32, #tpu.memory_space<vmem>>, %arg6: memref<1x1024xf32, #tpu.memory_space<vmem>>, %arg7: memref<1x1xf32, #tpu.memory_space<vmem>>, %arg8: memref<1x1xf32, #tpu.memory_space<vmem>>) attributes {dimension_semantics = [#tpu.dimension_semantics<arbitrary>], iteration_bounds = array<i64: 1>, scalar_prefetch = 0 : i64, scratch_operands = 0 : i64, tpu.core_type = #tpu.core_type<tc>, window_params = [{transform_indices = @transform_0, window_bounds = array<i64: 4, 16, 1024>}, {transform_indices = @transform_1, window_bounds = array<i64: 4, 1024>}, {transform_indices = @transform_2, window_bounds = array<i64: 4, 1024>}, {transform_indices = @transform_3, window_bounds = array<i64: 2, 1024>}, {transform_indices = @transform_4, window_bounds = array<i64: 1, 1024>}, {transform_indices = @transform_5, window_bounds = array<i64: 1, 1024>}, {pipeline_mode = #tpu.pipeline_mode<synchronous>, transform_indices = @transform_6, window_bounds = array<i64: 1, 1>}, {pipeline_mode = #tpu.pipeline_mode<synchronous>, transform_indices = @transform_7, window_bounds = array<i64: 1, 1>}]} {
    %c0_i32 = arith.constant 0 : i32
    %0 = arith.cmpi eq, %arg0, %c0_i32 : i32
    %1 = arith.extui %0 : i1 to i32
    %c0_i32_0 = arith.constant 0 : i32
    %2 = arith.cmpi ne, %1, %c0_i32_0 : i32
    scf.if %2 {
      %cst_47 = arith.constant 0.000000e+00 : f32
      %143 = vector.broadcast %cst_47 : f32 to vector<1x1xf32>
      %c0_48 = arith.constant 0 : index
      %c0_49 = arith.constant 0 : index
      %144 = vector.load %arg7[%c0_48, %c0_49] : memref<1x1xf32, #tpu.memory_space<vmem>>, vector<1x1xf32>
      tpu.vector_store %arg7[%c0_48, %c0_49], %143 {strides = array<i32>} : memref<1x1xf32, #tpu.memory_space<vmem>>, vector<1x1xf32>,
      %cst_50 = arith.constant 0.000000e+00 : f32
      %145 = vector.broadcast %cst_50 : f32 to vector<1x1xf32>
      %c0_51 = arith.constant 0 : index
      %c0_52 = arith.constant 0 : index
      %146 = vector.load %arg8[%c0_51, %c0_52] : memref<1x1xf32, #tpu.memory_space<vmem>>, vector<1x1xf32>
      tpu.vector_store %arg8[%c0_51, %c0_52], %145 {strides = array<i32>} : memref<1x1xf32, #tpu.memory_space<vmem>>, vector<1x1xf32>,
    } else {
    }
    %c0 = arith.constant 0 : index
    %c0_1 = arith.constant 0 : index
    %3 = vector.load %arg2[%c0, %c0_1] : memref<4x1024xf32, #tpu.memory_space<vmem>>, vector<4x1024xf32>
    %c0_2 = arith.constant 0 : index
    %c0_3 = arith.constant 0 : index
    %4 = vector.load %arg3[%c0_2, %c0_3] : memref<4x1024xf32, #tpu.memory_space<vmem>>, vector<4x1024xf32>
    %c0_4 = arith.constant 0 : index
    %c0_5 = arith.constant 0 : index
    %5 = vector.load %arg4[%c0_4, %c0_5] : memref<2x1024xf32, #tpu.memory_space<vmem>>, vector<2x1024xf32>
    %c0_6 = arith.constant 0 : index
    %c0_7 = arith.constant 0 : index
    %6 = vector.load %arg5[%c0_6, %c0_7] : memref<1x1024xf32, #tpu.memory_space<vmem>>, vector<1x1024xf32>
    %c0_8 = arith.constant 0 : index
    %c0_9 = arith.constant 0 : index
    %7 = vector.load %arg6[%c0_8, %c0_9] : memref<1x1024xf32, #tpu.memory_space<vmem>>, vector<1x1024xf32>
    %8 = vector.extract_strided_slice %3 {offsets = [0, 0], sizes = [1, 1024], strides = [1, 1]} : vector<4x1024xf32> to vector<1x1024xf32>
    %9 = vector.extract_strided_slice %3 {offsets = [1, 0], sizes = [1, 1024], strides = [1, 1]} : vector<4x1024xf32> to vector<1x1024xf32>
    %10 = vector.extract_strided_slice %3 {offsets = [2, 0], sizes = [1, 1024], strides = [1, 1]} : vector<4x1024xf32> to vector<1x1024xf32>
    %11 = vector.extract_strided_slice %3 {offsets = [3, 0], sizes = [1, 1024], strides = [1, 1]} : vector<4x1024xf32> to vector<1x1024xf32>
    %12 = vector.extract_strided_slice %4 {offsets = [0, 0], sizes = [1, 1024], strides = [1, 1]} : vector<4x1024xf32> to vector<1x1024xf32>
    %13 = vector.extract_strided_slice %4 {offsets = [1, 0], sizes = [1, 1024], strides = [1, 1]} : vector<4x1024xf32> to vector<1x1024xf32>
    %14 = vector.extract_strided_slice %4 {offsets = [2, 0], sizes = [1, 1024], strides = [1, 1]} : vector<4x1024xf32> to vector<1x1024xf32>
    %15 = vector.extract_strided_slice %4 {offsets = [3, 0], sizes = [1, 1024], strides = [1, 1]} : vector<4x1024xf32> to vector<1x1024xf32>
    %16 = arith.subf %10, %8 : vector<1x1024xf32>
    %17 = arith.subf %11, %9 : vector<1x1024xf32>
    %cst = arith.constant 1.000000e-07 : f32
    %18 = vector.broadcast %cst : f32 to vector<1x1024xf32>
    %19 = arith.addf %17, %18 : vector<1x1024xf32>
    %20 = arith.subf %14, %12 : vector<1x1024xf32>
    %21 = arith.subf %15, %13 : vector<1x1024xf32>
    %cst_10 = arith.constant 1.000000e-07 : f32
    %22 = vector.broadcast %cst_10 : f32 to vector<1x1024xf32>
    %23 = arith.addf %21, %22 : vector<1x1024xf32>
    %24 = arith.minimumf %10, %14 : vector<1x1024xf32>
    %25 = arith.maximumf %8, %12 : vector<1x1024xf32>
    %26 = arith.subf %24, %25 : vector<1x1024xf32>
    %cst_11 = arith.constant 0.000000e+00 : f32
    %27 = vector.broadcast %cst_11 : f32 to vector<1x1024xf32>
    %28 = arith.maximumf %26, %27 : vector<1x1024xf32>
    %29 = arith.minimumf %11, %15 : vector<1x1024xf32>
    %30 = arith.maximumf %9, %13 : vector<1x1024xf32>
    %31 = arith.subf %29, %30 : vector<1x1024xf32>
    %cst_12 = arith.constant 0.000000e+00 : f32
    %32 = vector.broadcast %cst_12 : f32 to vector<1x1024xf32>
    %33 = arith.maximumf %31, %32 : vector<1x1024xf32>
    %34 = arith.mulf %28, %33 : vector<1x1024xf32>
    %35 = arith.mulf %16, %19 : vector<1x1024xf32>
    %36 = arith.mulf %20, %23 : vector<1x1024xf32>
    %37 = arith.addf %35, %36 : vector<1x1024xf32>
    %38 = arith.subf %37, %34 : vector<1x1024xf32>
    %cst_13 = arith.constant 1.000000e-07 : f32
    %39 = vector.broadcast %cst_13 : f32 to vector<1x1024xf32>
    %40 = arith.addf %38, %39 : vector<1x1024xf32>
    %41 = arith.divf %34, %40 : vector<1x1024xf32>
    %42 = arith.maximumf %10, %14 : vector<1x1024xf32>
    %43 = arith.minimumf %8, %12 : vector<1x1024xf32>
    %44 = arith.subf %42, %43 : vector<1x1024xf32>
    %45 = arith.maximumf %11, %15 : vector<1x1024xf32>
    %46 = arith.minimumf %9, %13 : vector<1x1024xf32>
    %47 = arith.subf %45, %46 : vector<1x1024xf32>
    %48 = arith.mulf %44, %44 : vector<1x1024xf32>
    %49 = arith.mulf %47, %47 : vector<1x1024xf32>
    %50 = arith.addf %48, %49 : vector<1x1024xf32>
    %cst_14 = arith.constant 1.000000e-07 : f32
    %51 = vector.broadcast %cst_14 : f32 to vector<1x1024xf32>
    %52 = arith.addf %50, %51 : vector<1x1024xf32>
    %53 = arith.addf %12, %14 : vector<1x1024xf32>
    %54 = arith.subf %53, %8 : vector<1x1024xf32>
    %55 = arith.subf %54, %10 : vector<1x1024xf32>
    %56 = arith.mulf %55, %55 : vector<1x1024xf32>
    %57 = arith.addf %13, %15 : vector<1x1024xf32>
    %58 = arith.subf %57, %9 : vector<1x1024xf32>
    %59 = arith.subf %58, %11 : vector<1x1024xf32>
    %60 = arith.mulf %59, %59 : vector<1x1024xf32>
    %61 = arith.addf %56, %60 : vector<1x1024xf32>
    %cst_15 = arith.constant 2.500000e-01 : f32
    %62 = vector.broadcast %cst_15 : f32 to vector<1x1024xf32>
    %63 = arith.mulf %61, %62 : vector<1x1024xf32>
    %64 = arith.subf %7, %41 : vector<1x1024xf32>
    %cst_16 = arith.constant 1.00000012 : f32
    %65 = vector.broadcast %cst_16 : f32 to vector<1x1024xf32>
    %66 = arith.addf %64, %65 : vector<1x1024xf32>
    %67 = arith.divf %7, %66 : vector<1x1024xf32>
    %68 = arith.divf %63, %52 : vector<1x1024xf32>
    %69 = arith.mulf %7, %67 : vector<1x1024xf32>
    %70 = arith.addf %68, %69 : vector<1x1024xf32>
    %71 = arith.subf %41, %70 : vector<1x1024xf32>
    %cst_17 = arith.constant 0.000000e+00 : f32
    %72 = vector.broadcast %cst_17 : f32 to vector<1x1024xf32>
    %73 = arith.cmpf ogt, %6, %72 : vector<1x1024xf32>
    %cst_18 = arith.constant 1.000000e+00 : f32
    %74 = vector.broadcast %cst_18 : f32 to vector<1x1024xf32>
    %75 = arith.subf %74, %71 : vector<1x1024xf32>
    %76 = arith.mulf %75, %6 : vector<1x1024xf32>
    %cst_19 = arith.constant 0.000000e+00 : f32
    %77 = vector.broadcast %cst_19 : f32 to vector<1x1024xf32>
    %78 = arith.select %73, %76, %77 : vector<1x1024xi1>, vector<1x1024xf32>
    %79 = vector.extract_strided_slice %4 {offsets = [0, 0], sizes = [2, 1024], strides = [1, 1]} : vector<4x1024xf32> to vector<2x1024xf32>
    %80 = arith.subf %5, %79 : vector<2x1024xf32>
    %81 = vector.extract_strided_slice %4 {offsets = [2, 0], sizes = [2, 1024], strides = [1, 1]} : vector<4x1024xf32> to vector<2x1024xf32>
    %82 = arith.subf %81, %5 : vector<2x1024xf32>
    %83 = tpu.concatenate %80, %82 in 0 : vector<2x1024xf32>, vector<2x1024xf32> -> vector<4x1024xf32>
    %cst_20 = arith.constant 0.000000e+00 : f32
    %cst_21 = arith.constant 1.499000e+01 : f32
    %84 = vector.broadcast %cst_20 : f32 to vector<4x1024xf32>
    %85 = arith.maximumf %84, %83 : vector<4x1024xf32>
    %86 = vector.broadcast %cst_21 : f32 to vector<4x1024xf32>
    %87 = arith.minimumf %86, %85 : vector<4x1024xf32>
    %88 = math.floor %87 : vector<4x1024xf32>
    %cst_22 = arith.constant 1.000000e+00 : f32
    %89 = vector.broadcast %cst_22 : f32 to vector<4x1024xf32>
    %90 = arith.addf %88, %89 : vector<4x1024xf32>
    %91 = arith.subf %90, %87 : vector<4x1024xf32>
    %cst_23 = arith.constant 1.000000e+00 : f32
    %92 = vector.broadcast %cst_23 : f32 to vector<4x1024xf32>
    %93 = arith.subf %92, %91 : vector<4x1024xf32>
    %94 = arith.fptosi %88 : vector<4x1024xf32> to vector<4x1024xi32>
    %c0_24 = arith.constant 0 : index
    %c0_25 = arith.constant 0 : index
    %c0_26 = arith.constant 0 : index
    %95 = vector.load %arg1[%c0_24, %c0_25, %c0_26] : memref<4x16x1024xf32, #tpu.memory_space<vmem>>, vector<4x16x1024xf32>
    %cst_27 = arith.constant dense<0xFF800000> : vector<4x1024xf32>
    %96 = vector.multi_reduction <maximumf>, %95, %cst_27 [1] : vector<4x16x1024xf32> to vector<4x1024xf32>
    %97 = vector.shape_cast %96 : vector<4x1024xf32> to vector<4x1x1024xf32>
    %98 = vector.broadcast %97 : vector<4x1x1024xf32> to vector<4x16x1024xf32>
    %99 = arith.subf %95, %98 : vector<4x16x1024xf32>
    %100 = math.exp %99 : vector<4x16x1024xf32>
    %cst_28 = arith.constant dense<0.000000e+00> : vector<4x1024xf32>
    %101 = vector.multi_reduction <add>, %100, %cst_28 [1] : vector<4x16x1024xf32> to vector<4x1024xf32>
    %102 = math.log %101 : vector<4x1024xf32>
    %103 = arith.addf %96, %102 : vector<4x1024xf32>
    %104 = tpu.iota {dimensions = array<i32: 1>} : vector<4x16x1024xi32>
    %105 = vector.shape_cast %94 : vector<4x1024xi32> to vector<4x1x1024xi32>
    %106 = vector.broadcast %105 : vector<4x1x1024xi32> to vector<4x16x1024xi32>
    %107 = arith.cmpi eq, %104, %106 : vector<4x16x1024xi32>
    %cst_29 = arith.constant 0.000000e+00 : f32
    %108 = vector.broadcast %cst_29 : f32 to vector<4x16x1024xf32>
    %109 = arith.select %107, %95, %108 : vector<4x16x1024xi1>, vector<4x16x1024xf32>
    %cst_30 = arith.constant dense<0.000000e+00> : vector<4x1024xf32>
    %110 = vector.multi_reduction <add>, %109, %cst_30 [1] : vector<4x16x1024xf32> to vector<4x1024xf32>
    %111 = vector.shape_cast %94 : vector<4x1024xi32> to vector<4x1x1024xi32>
    %c1_i32 = arith.constant 1 : i32
    %112 = vector.broadcast %c1_i32 : i32 to vector<4x1x1024xi32>
    %113 = arith.addi %111, %112 : vector<4x1x1024xi32>
    %114 = vector.broadcast %113 : vector<4x1x1024xi32> to vector<4x16x1024xi32>
    %115 = arith.cmpi eq, %104, %114 : vector<4x16x1024xi32>
    %cst_31 = arith.constant 0.000000e+00 : f32
    %116 = vector.broadcast %cst_31 : f32 to vector<4x16x1024xf32>
    %117 = arith.select %115, %95, %116 : vector<4x16x1024xi1>, vector<4x16x1024xf32>
    %cst_32 = arith.constant dense<0.000000e+00> : vector<4x1024xf32>
    %118 = vector.multi_reduction <add>, %117, %cst_32 [1] : vector<4x16x1024xf32> to vector<4x1024xf32>
    %119 = arith.subf %103, %110 : vector<4x1024xf32>
    %120 = arith.mulf %119, %91 : vector<4x1024xf32>
    %121 = arith.subf %103, %118 : vector<4x1024xf32>
    %122 = arith.mulf %121, %93 : vector<4x1024xf32>
    %123 = arith.addf %120, %122 : vector<4x1024xf32>
    %cst_33 = arith.constant dense<0.000000e+00> : vector<1024xf32>
    %124 = vector.multi_reduction <add>, %123, %cst_33 [0] : vector<4x1024xf32> to vector<1024xf32>
    %125 = vector.shape_cast %124 : vector<1024xf32> to vector<1x1024xf32>
    %cst_34 = arith.constant 2.500000e-01 : f32
    %126 = vector.broadcast %cst_34 : f32 to vector<1x1024xf32>
    %127 = arith.mulf %125, %126 : vector<1x1024xf32>
    %cst_35 = arith.constant 0.000000e+00 : f32
    %128 = vector.broadcast %cst_35 : f32 to vector<1x1024xf32>
    %129 = arith.cmpf ogt, %6, %128 : vector<1x1024xf32>
    %130 = arith.mulf %127, %6 : vector<1x1024xf32>
    %cst_36 = arith.constant 0.000000e+00 : f32
    %131 = vector.broadcast %cst_36 : f32 to vector<1x1024xf32>
    %132 = arith.select %129, %130, %131 : vector<1x1024xi1>, vector<1x1024xf32>
    %c0_37 = arith.constant 0 : index
    %c0_38 = arith.constant 0 : index
    %133 = vector.load %arg7[%c0_37, %c0_38] : memref<1x1xf32, #tpu.memory_space<vmem>>, vector<1x1xf32>
    %cst_39 = arith.constant dense<0.000000e+00> : vector<1xf32>
    %134 = vector.multi_reduction <add>, %78, %cst_39 [1] : vector<1x1024xf32> to vector<1xf32>
    %135 = vector.shape_cast %134 : vector<1xf32> to vector<1x1xf32>
    %136 = arith.addf %133, %135 : vector<1x1xf32>
    %c0_40 = arith.constant 0 : index
    %c0_41 = arith.constant 0 : index
    %137 = vector.load %arg7[%c0_40, %c0_41] : memref<1x1xf32, #tpu.memory_space<vmem>>, vector<1x1xf32>
    tpu.vector_store %arg7[%c0_40, %c0_41], %136 {strides = array<i32>} : memref<1x1xf32, #tpu.memory_space<vmem>>, vector<1x1xf32>,
    %c0_42 = arith.constant 0 : index
    %c0_43 = arith.constant 0 : index
    %138 = vector.load %arg8[%c0_42, %c0_43] : memref<1x1xf32, #tpu.memory_space<vmem>>, vector<1x1xf32>
    %cst_44 = arith.constant dense<0.000000e+00> : vector<1xf32>
    %139 = vector.multi_reduction <add>, %132, %cst_44 [1] : vector<1x1024xf32> to vector<1xf32>
    %140 = vector.shape_cast %139 : vector<1xf32> to vector<1x1xf32>
    %141 = arith.addf %138, %140 : vector<1x1xf32>
    %c0_45 = arith.constant 0 : index
    %c0_46 = arith.constant 0 : index
    %142 = vector.load %arg8[%c0_45, %c0_46] : memref<1x1xf32, #tpu.memory_space<vmem>>, vector<1x1xf32>
    tpu.vector_store %arg8[%c0_45, %c0_46], %141 {strides = array<i32>} : memref<1x1xf32, #tpu.memory_space<vmem>>, vector<1x1xf32>,
    return
  }
  func.func @transform_0(%arg0: i32) -> (i32, i32, i32) {
    %c0_i32 = arith.constant 0 : i32
    %c0_i32_0 = arith.constant 0 : i32
    %c0_i32_1 = arith.constant 0 : i32
    return %c0_i32, %c0_i32_0, %arg0 : i32, i32, i32
  }
  func.func @transform_1(%arg0: i32) -> (i32, i32) {
    %c0_i32 = arith.constant 0 : i32
    %c0_i32_0 = arith.constant 0 : i32
    return %c0_i32, %arg0 : i32, i32
  }
  func.func @transform_2(%arg0: i32) -> (i32, i32) {
    %c0_i32 = arith.constant 0 : i32
    %c0_i32_0 = arith.constant 0 : i32
    return %c0_i32, %arg0 : i32, i32
  }
  func.func @transform_3(%arg0: i32) -> (i32, i32) {
    %c0_i32 = arith.constant 0 : i32
    %c0_i32_0 = arith.constant 0 : i32
    return %c0_i32, %arg0 : i32, i32
  }
  func.func @transform_4(%arg0: i32) -> (i32, i32) {
    %c0_i32 = arith.constant 0 : i32
    %c0_i32_0 = arith.constant 0 : i32
    return %c0_i32, %arg0 : i32, i32
  }
  func.func @transform_5(%arg0: i32) -> (i32, i32) {
    %c0_i32 = arith.constant 0 : i32
    %c0_i32_0 = arith.constant 0 : i32
    return %c0_i32, %arg0 : i32, i32
  }
  func.func @transform_6(%arg0: i32) -> (i32, i32) {
    %c0_i32 = arith.constant 0 : i32
    %c0_i32_0 = arith.constant 0 : i32
    %c0_i32_1 = arith.constant 0 : i32
    return %c0_i32, %c0_i32_0 : i32, i32
  }
  func.func @transform_7(%arg0: i32) -> (i32, i32) {
    %c0_i32 = arith.constant 0 : i32
    %c0_i32_0 = arith.constant 0 : i32
    %c0_i32_1 = arith.constant 0 : i32
    return %c0_i32, %c0_i32_0 : i32, i32
  }
}

</mosaic_0001>

<llo_original>
// kernel: tpu_custom_call.1
$region0: #{tpu_custom_call.1}
  #allocation0 [shape = 'u32[]', space=smem, size = 0x4, offset = 0x4, fixed_abs, tag = 'smem constant byte address 0x4 - core index']
  #allocation1 [shape = 'u32[144,128]{1,0:T(1,128)}', space=vmem, size = 0x12000, scoped, tag = 'internal scratch']
  %s0 = inlined_call_operand.hbm [shape: f32[4,16,1024], index: 0, kind: input, shape index: {}]
  %s1 = inlined_call_operand.hbm [shape: f32[4,1024], index: 1, kind: input, shape index: {}]
  %s2 = inlined_call_operand.hbm [shape: f32[4,1024], index: 2, kind: input, shape index: {}]
  %s3 = inlined_call_operand.hbm [shape: f32[2,1024], index: 3, kind: input, shape index: {}]
  %s4 = inlined_call_operand.vmem [shape: f32[1,1024], index: 4, kind: input, shape index: {}]
  %s5 = inlined_call_operand.vmem [shape: f32[1,1024], index: 5, kind: input, shape index: {}]
  %s6 = inlined_call_operand.hbm [shape: f32[1,1], index: 6, kind: output, shape index: {0}]
  %s7 = inlined_call_operand.hbm [shape: f32[1,1], index: 7, kind: output, shape index: {1}]
  %8 = xla_tuple %s6, %s7
  %s9 = sld [smem:[#allocation0]]
  $region62: #{tpu_custom_call.1} parent=0
    _
  %s11 = ssub.s32 1, %s9
  %s12 = scalar_select 0, %s11, %s9
  $region1: #{tpu_custom_call.1} parent=0
    #allocation2 [shape = 'u8[262144]{0}', space=vmem, size = 0x40000, scoped, tag = 'input window, operand 0, single buffered']
    #allocation3 [shape = 's32[1]{0}', space=sflag, size = 0x4, scoped, tag = 'scoped memory for tpu_custom_call.1']
    #allocation4 [shape = 's32[1]{0}', space=sflag, size = 0x4, scoped, tag = 'scoped memory for tpu_custom_call.1']
    #allocation5 [shape = 'u8[16384]{0}', space=vmem, size = 0x4000, scoped, tag = 'input window, operand 1, single buffered']
    #allocation6 [shape = 's32[1]{0}', space=sflag, size = 0x4, scoped, tag = 'scoped memory for tpu_custom_call.1']
    #allocation7 [shape = 'u8[16384]{0}', space=vmem, size = 0x4000, scoped, tag = 'input window, operand 2, single buffered']
    #allocation8 [shape = 'u8[8192]{0}', space=vmem, size = 0x2000, scoped, tag = 'input window, operand 3, single buffered']
    #allocation9 [shape = 's32[1]{0}', space=sflag, size = 0x4, scoped, tag = 'scoped memory for tpu_custom_call.1']
    #allocation10 [shape = 'u8[512]{0}', space=vmem, size = 0x400, scoped, tag = 'output window, operand 0, single buffered']
    #allocation11 [shape = 'u8[512]{0}', space=vmem, size = 0x400, scoped, tag = 'output window, operand 1, single buffered']
    #allocation12 [shape = 's32[1]{0}', space=sflag, size = 0x4, scoped, tag = 'scoped memory for tpu_custom_call.1']
    %13 = vsyncpa [#allocation3], 0
    %14 = vsyncpa [#allocation6], 0
    %15 = vsyncpa [#allocation9], 0
    %16 = vsyncpa [#allocation4], 0
    %17 = vsyncpa [#allocation12], 0
    // Predicated region
    $region2: #{tpu_custom_call.1} parent=1 // pred_check
      _
    $region3: #{tpu_custom_call.1} parent=1 // pred_check_branch
      %19 = sbr.rel (0) target = $region5
    $region4: #{tpu_custom_call.1} parent=1 // pred_region
      %s21 = ssub.s32 8192, 8192
      %22 = vsyncadd [#allocation3], %s21
      %s23 = sshll.u32 [#allocation2], 4
      %s24 = int_to_ptr.vmem [resolvable:$true] %s23
      %29 = dma.hbm_to_vmem [thread:$0]  %s0, 8192, %s24, [#allocation3], 1024, 1024, 64
    $region5: #{tpu_custom_call.1} parent=1 // pred_fallthru
      _
    // Predicated region
    $region6: #{tpu_custom_call.1} parent=1 // pred_check
      _
    $region7: #{tpu_custom_call.1} parent=1 // pred_check_branch
      %31 = sbr.rel (0) target = $region9
    $region8: #{tpu_custom_call.1} parent=1 // pred_region
      %s33 = ssub.s32 512, 512
      %34 = vsyncadd [#allocation6], %s33
      %s36 = sshll.u32 [#allocation5], 4
      %s37 = int_to_ptr.vmem [resolvable:$true] %s36
      %39 = dma.hbm_to_vmem [thread:$0]  %s1, 512, %s37, [#allocation6]
    $region9: #{tpu_custom_call.1} parent=1 // pred_fallthru
      _
    // Predicated region
    $region10: #{tpu_custom_call.1} parent=1 // pred_check
      _
    $region11: #{tpu_custom_call.1} parent=1 // pred_check_branch
      %41 = sbr.rel (0) target = $region13
    $region12: #{tpu_custom_call.1} parent=1 // pred_region
      %s43 = ssub.s32 512, 512
      %44 = vsyncadd [#allocation6], %s43
      %s46 = sshll.u32 [#allocation7], 4
      %s47 = int_to_ptr.vmem [resolvable:$true] %s46
      %49 = dma.hbm_to_vmem [thread:$0]  %s2, 512, %s47, [#allocation6]
    $region13: #{tpu_custom_call.1} parent=1 // pred_fallthru
      _
    // Predicated region
    $region14: #{tpu_custom_call.1} parent=1 // pred_check
      _
    $region15: #{tpu_custom_call.1} parent=1 // pred_check_branch
      %51 = sbr.rel (0) target = $region17
    $region16: #{tpu_custom_call.1} parent=1 // pred_region
      %s53 = ssub.s32 256, 256
      %54 = vsyncadd [#allocation9], %s53
      %s56 = sshll.u32 [#allocation8], 4
      %s57 = int_to_ptr.vmem [resolvable:$true] %s56
      %59 = dma.hbm_to_vmem [thread:$0]  %s3, 256, %s57, [#allocation9]
    $region17: #{tpu_custom_call.1} parent=1 // pred_fallthru
      _
    // Predicated region
    $region18: #{tpu_custom_call.1} parent=1 // pred_check
      _
    $region19: #{tpu_custom_call.1} parent=1 // pred_check_branch
      %61 = sbr.rel (0) target = $region21
    $region20: #{tpu_custom_call.1} parent=1 // pred_region
      _
    $region21: #{tpu_custom_call.1} parent=1 // pred_fallthru
      _
    // Predicated region
    $region22: #{tpu_custom_call.1} parent=1 // pred_check
      _
    $region23: #{tpu_custom_call.1} parent=1 // pred_check_branch
      %63 = sbr.rel (0) target = $region25
    $region24: #{tpu_custom_call.1} parent=1 // pred_region
      _
    $region25: #{tpu_custom_call.1} parent=1 // pred_fallthru
      _
    // Predicated region
    $region26: #{tpu_custom_call.1} parent=1 // pred_check
      _
    $region27: #{tpu_custom_call.1} parent=1 // pred_check_branch
      %65 = sbr.rel (0) target = $region29
    $region28: #{tpu_custom_call.1} parent=1 // pred_region
      %66 = dma.done [#allocation3], 8192
    $region29: #{tpu_custom_call.1} parent=1 // pred_fallthru
      _
    // Predicated region
    $region30: #{tpu_custom_call.1} parent=1 // pred_check
      _
    $region31: #{tpu_custom_call.1} parent=1 // pred_check_branch
      %68 = sbr.rel (0) target = $region33
    $region32: #{tpu_custom_call.1} parent=1 // pred_region
      %69 = dma.done [#allocation6], 512
    $region33: #{tpu_custom_call.1} parent=1 // pred_fallthru
      _
    // Predicated region
    $region34: #{tpu_custom_call.1} parent=1 // pred_check
      _
    $region35: #{tpu_custom_call.1} parent=1 // pred_check_branch
      %71 = sbr.rel (0) target = $region37
    $region36: #{tpu_custom_call.1} parent=1 // pred_region
      %72 = dma.done [#allocation6], 512
    $region37: #{tpu_custom_call.1} parent=1 // pred_fallthru
      _
    // Predicated region
    $region38: #{tpu_custom_call.1} parent=1 // pred_check
      _
    $region39: #{tpu_custom_call.1} parent=1 // pred_check_branch
      %74 = sbr.rel (0) target = $region41
    $region40: #{tpu_custom_call.1} parent=1 // pred_region
      %75 = dma.done [#allocation9], 256
    $region41: #{tpu_custom_call.1} parent=1 // pred_fallthru
      _
    %p76 = scmp.eq.s32.totalorder 0, 0
    // Predicated region
    $region42: #{tpu_custom_call.1} parent=1 // pred_check
      %p77 = pneg %p76
    $region43: #{tpu_custom_call.1} parent=1 // pred_check_branch
      %79 = sbr.rel (%p77) target = $region45
    $region44: #{tpu_custom_call.1} parent=1 // pred_region
      %vm80 = vcmask 0
      %81 = vst.msk [vmem:[#allocation10] sm:$0x1] %vm80, 0.0
      %82 = vst.msk [vmem:[#allocation11] sm:$0x1] %vm80, 0.0
    $region45: #{tpu_custom_call.1} parent=1 // pred_fallthru
      _
    %v83 = vld [vmem:[#allocation5] sm:$0xff]
    %v84 = vld [vmem:[#allocation5 + $0x8] sm:$0xff]
    %v85 = vld [vmem:[#allocation5 + $0x10] sm:$0xff]
    %v86 = vld [vmem:[#allocation5 + $0x18] sm:$0xff]
    %v87 = vld [vmem:[#allocation7] sm:$0xff]
    %v88 = vld [vmem:[#allocation7 + $0x8] sm:$0xff]
    %v89 = vld [vmem:[#allocation7 + $0x10] sm:$0xff]
    %v90 = vld [vmem:[#allocation7 + $0x18] sm:$0xff]
    %v91 = vld [vmem:[#allocation8] sm:$0xff]
    %v92 = vld [vmem:[#allocation8 + $0x8] sm:$0xff]
    %v93 = vld [vmem:[%s4] sm:$0xff]
    %v94 = vld [vmem:[%s5] sm:$0xff]
    %v99 = vrot.slane %v83, 6
    %v100 = vrot.slane %v84, 6
    %v101 = vrot.slane %v85, 6
    %v102 = vrot.slane %v86, 6
    %v107 = vsub.f32 %v83, %v99
    %v108 = vsub.f32 %v84, %v100
    %v109 = vsub.f32 %v85, %v101
    %v110 = vsub.f32 %v86, %v102
    %v111 = vadd.f32 %v107, 1e-07
    %v112 = vadd.f32 %v108, 1e-07
    %v113 = vadd.f32 %v109, 1e-07
    %v114 = vadd.f32 %v110, 1e-07
    %v119 = vrot.slane %v87, 6
    %v120 = vrot.slane %v88, 6
    %v121 = vrot.slane %v89, 6
    %v122 = vrot.slane %v90, 6
    %v127 = vsub.f32 %v87, %v119
    %v128 = vsub.f32 %v88, %v120
    %v129 = vsub.f32 %v89, %v121
    %v130 = vsub.f32 %v90, %v122
    %v131 = vadd.f32 %v127, 1e-07
    %v132 = vadd.f32 %v128, 1e-07
    %v133 = vadd.f32 %v129, 1e-07
    %v134 = vadd.f32 %v130, 1e-07
    %v135 = vmin.f32 %v83, %v87
    %v136 = vmin.f32 %v84, %v88
    %v137 = vmin.f32 %v85, %v89
    %v138 = vmin.f32 %v86, %v90
    %v139 = vmax.f32 %v83, %v87
    %v140 = vmax.f32 %v84, %v88
    %v141 = vmax.f32 %v85, %v89
    %v142 = vmax.f32 %v86, %v90
    %v147 = vrot.slane %v139, 6
    %v148 = vrot.slane %v140, 6
    %v149 = vrot.slane %v141, 6
    %v150 = vrot.slane %v142, 6
    %v155 = vsub.f32 %v135, %v147
    %v156 = vsub.f32 %v136, %v148
    %v157 = vsub.f32 %v137, %v149
    %v158 = vsub.f32 %v138, %v150
    %v159 = vmax.f32 %v155, 0.0
    %v160 = vmax.f32 %v156, 0.0
    %v161 = vmax.f32 %v157, 0.0
    %v162 = vmax.f32 %v158, 0.0
    %v167 = vrot.slane %v159, 5
    %v168 = vrot.slane %v167, 4
    %v169 = vrot.slane %v160, 5
    %v170 = vrot.slane %v169, 4
    %v171 = vrot.slane %v161, 5
    %v172 = vrot.slane %v171, 4
    %v173 = vrot.slane %v162, 5
    %v174 = vrot.slane %v173, 4
    %v179 = vmul.f32 %v159, %v168
    %v180 = vmul.f32 %v160, %v170
    %v181 = vmul.f32 %v161, %v172
    %v182 = vmul.f32 %v162, %v174
    %v187 = vrot.slane %v111, 5
    %v188 = vrot.slane %v187, 4
    %v189 = vrot.slane %v112, 5
    %v190 = vrot.slane %v189, 4
    %v191 = vrot.slane %v113, 5
    %v192 = vrot.slane %v191, 4
    %v193 = vrot.slane %v114, 5
    %v194 = vrot.slane %v193, 4
    %v199 = vmul.f32 %v107, %v188
    %v200 = vmul.f32 %v108, %v190
    %v201 = vmul.f32 %v109, %v192
    %v202 = vmul.f32 %v110, %v194
    %v207 = vrot.slane %v131, 5
    %v208 = vrot.slane %v207, 4
    %v209 = vrot.slane %v132, 5
    %v210 = vrot.slane %v209, 4
    %v211 = vrot.slane %v133, 5
    %v212 = vrot.slane %v211, 4
    %v213 = vrot.slane %v134, 5
    %v214 = vrot.slane %v213, 4
    %v219 = vmul.f32 %v127, %v208
    %v220 = vmul.f32 %v128, %v210
    %v221 = vmul.f32 %v129, %v212
    %v222 = vmul.f32 %v130, %v214
    %v223 = vadd.f32 %v199, %v219
    %v224 = vadd.f32 %v200, %v220
    %v225 = vadd.f32 %v201, %v221
    %v226 = vadd.f32 %v202, %v222
    %v227 = vsub.f32 %v223, %v179
    %v228 = vsub.f32 %v224, %v180
    %v229 = vsub.f32 %v225, %v181
    %v230 = vsub.f32 %v226, %v182
    %v231 = vadd.f32 %v227, 1e-07
    %v232 = vadd.f32 %v228, 1e-07
    %v233 = vadd.f32 %v229, 1e-07
    %v234 = vadd.f32 %v230, 1e-07
    %v235 = vrcp.pop %v231
    %v236 = vmul.f32 %v179, %v235
    %v237 = vrcp.pop %v232
    %v238 = vmul.f32 %v180, %v237
    %v239 = vrcp.pop %v233
    %v240 = vmul.f32 %v181, %v239
    %v241 = vrcp.pop %v234
    %v242 = vmul.f32 %v182, %v241
    %v247 = vrot.slane %v135, 6
    %v248 = vrot.slane %v136, 6
    %v249 = vrot.slane %v137, 6
    %v250 = vrot.slane %v138, 6
    %v255 = vsub.f32 %v139, %v247
    %v256 = vsub.f32 %v140, %v248
    %v257 = vsub.f32 %v141, %v249
    %v258 = vsub.f32 %v142, %v250
    %v259 = vmul.f32 %v255, %v255
    %v260 = vmul.f32 %v256, %v256
    %v261 = vmul.f32 %v257, %v257
    %v262 = vmul.f32 %v258, %v258
    %v267 = vrot.slane %v259, 5
    %v268 = vrot.slane %v267, 4
    %v269 = vrot.slane %v260, 5
    %v270 = vrot.slane %v269, 4
    %v271 = vrot.slane %v261, 5
    %v272 = vrot.slane %v271, 4
    %v273 = vrot.slane %v262, 5
    %v274 = vrot.slane %v273, 4
    %v279 = vadd.f32 %v259, %v268
    %v280 = vadd.f32 %v260, %v270
    %v281 = vadd.f32 %v261, %v272
    %v282 = vadd.f32 %v262, %v274
    %v283 = vadd.f32 %v279, 1e-07
    %v284 = vadd.f32 %v280, 1e-07
    %v285 = vadd.f32 %v281, 1e-07
    %v286 = vadd.f32 %v282, 1e-07
    %v287 = vrot.slane %v119, 4
    %v288 = vrot.slane %v120, 4
    %v289 = vrot.slane %v121, 4
    %v290 = vrot.slane %v122, 4
    %v295 = vadd.f32 %v87, %v287
    %v296 = vadd.f32 %v88, %v288
    %v297 = vadd.f32 %v89, %v289
    %v298 = vadd.f32 %v90, %v290
    %v299 = vsub.f32 %v295, %v83
    %v300 = vsub.f32 %v296, %v84
    %v301 = vsub.f32 %v297, %v85
    %v302 = vsub.f32 %v298, %v86
    %v303 = vrot.slane %v99, 4
    %v304 = vrot.slane %v100, 4
    %v305 = vrot.slane %v101, 4
    %v306 = vrot.slane %v102, 4
    %v311 = vsub.f32 %v299, %v303
    %v312 = vsub.f32 %v300, %v304
    %v313 = vsub.f32 %v301, %v305
    %v314 = vsub.f32 %v302, %v306
    %v315 = vmul.f32 %v311, %v311
    %v316 = vmul.f32 %v312, %v312
    %v317 = vmul.f32 %v313, %v313
    %v318 = vmul.f32 %v314, %v314
    %v323 = vrot.slane %v315, 5
    %v324 = vrot.slane %v323, 4
    %v325 = vrot.slane %v316, 5
    %v326 = vrot.slane %v325, 4
    %v327 = vrot.slane %v317, 5
    %v328 = vrot.slane %v327, 4
    %v329 = vrot.slane %v318, 5
    %v330 = vrot.slane %v329, 4
    %v335 = vadd.f32 %v315, %v324
    %v336 = vadd.f32 %v316, %v326
    %v337 = vadd.f32 %v317, %v328
    %v338 = vadd.f32 %v318, %v330
    %v339 = vmul.f32 %v335, 0.25
    %v340 = vmul.f32 %v336, 0.25
    %v341 = vmul.f32 %v337, 0.25
    %v342 = vmul.f32 %v338, 0.25
    %v348 = vunpack.c.l.s4 1966171168
    %v349 = vunpack.c.0.s8 %v348
    %v350 = vlaneseq
    %v351 = vshrl.u32 %v350, 7
    %v352 = vsub.s32 %v349, %v351
    %v353 = vrot.slane %v236, %v352
    %v355 = vunpack.c.l.s4 1966171168
    %v356 = vunpack.c.0.s8 %v355
    %v357 = vlaneseq
    %v358 = vshrl.u32 %v357, 7
    %v359 = vsub.s32 %v356, %v358
    %v360 = vrot.slane %v238, %v359
    %v362 = vunpack.c.l.s4 1966171168
    %v363 = vunpack.c.0.s8 %v362
    %v364 = vlaneseq
    %v365 = vshrl.u32 %v364, 7
    %v366 = vsub.s32 %v363, %v365
    %v367 = vrot.slane %v240, %v366
    %v369 = vunpack.c.l.s4 1966171168
    %v370 = vunpack.c.0.s8 %v369
    %v371 = vlaneseq
    %v372 = vshrl.u32 %v371, 7
    %v373 = vsub.s32 %v370, %v372
    %v374 = vrot.slane %v242, %v373
    %v375 = vcombine.low %v353, %v360
    %v376 = vcombine.low %v367, %v374
    %v378 = vunpack.c.l.s4 1966171168
    %v379 = vunpack.c.0.s8 %v378
    %v380 = vlaneseq
    %v381 = vshrl.u32 %v380, 7
    %v382 = vsub.s32 %v379, %v381
    %v383 = vrot.slane %v375, %v382
    %v385 = vunpack.c.l.s4 1966171168
    %v386 = vunpack.c.0.s8 %v385
    %v387 = vlaneseq
    %v388 = vshrl.u32 %v387, 7
    %v389 = vsub.s32 %v386, %v388
    %v390 = vrot.slane %v376, %v389
    %v391 = vcombine.high %v383, %v390
    %v393 = vsub.f32 %v94, %v391
    %v394 = vadd.f32 %v393, 1.0000001
    %v395 = vrcp.pop %v394
    %v396 = vmul.f32 %v94, %v395
    %v401 = vrot.slane %v283, 6
    %v402 = vrot.slane %v401, 4
    %v403 = vrot.slane %v284, 6
    %v404 = vrot.slane %v403, 4
    %v405 = vrot.slane %v285, 6
    %v406 = vrot.slane %v405, 4
    %v407 = vrot.slane %v286, 6
    %v408 = vrot.slane %v407, 4
    %v413 = vrcp.pop %v402
    %v414 = vmul.f32 %v339, %v413
    %v415 = vrcp.pop %v404
    %v416 = vmul.f32 %v340, %v415
    %v417 = vrcp.pop %v406
    %v418 = vmul.f32 %v341, %v417
    %v419 = vrcp.pop %v408
    %v420 = vmul.f32 %v342, %v419
    %v421 = vmul.f32 %v94, %v396
    %v424 = vunpack.c.l.s4 286326784
    %v425 = vunpack.c.0.s8 %v424
    %v426 = vlaneseq
    %v427 = vshrl.u32 %v426, 7
    %v428 = vsub.s32 %v425, %v427
    %v429 = vrot.slane %v421, %v428
    %v431 = vunpack.c.l.s4 858989090
    %v432 = vunpack.c.0.s8 %v431
    %v433 = vlaneseq
    %v434 = vshrl.u32 %v433, 7
    %v435 = vsub.s32 %v432, %v434
    %v436 = vrot.slane %v421, %v435
    %v438 = vunpack.c.l.s4 1431651396
    %v439 = vunpack.c.0.s8 %v438
    %v440 = vlaneseq
    %v441 = vshrl.u32 %v440, 7
    %v442 = vsub.s32 %v439, %v441
    %v443 = vrot.slane %v421, %v442
    %v445 = vunpack.c.l.s4 2004313702
    %v446 = vunpack.c.0.s8 %v445
    %v447 = vlaneseq
    %v448 = vshrl.u32 %v447, 7
    %v449 = vsub.s32 %v446, %v448
    %v450 = vrot.slane %v421, %v449
    %v455 = vadd.f32 %v414, %v429
    %v456 = vadd.f32 %v416, %v436
    %v457 = vadd.f32 %v418, %v443
    %v458 = vadd.f32 %v420, %v450
    %v463 = vrot.slane %v455, 6
    %v464 = vrot.slane %v456, 6
    %v465 = vrot.slane %v457, 6
    %v466 = vrot.slane %v458, 6
    %v471 = vsub.f32 %v236, %v463
    %v472 = vsub.f32 %v238, %v464
    %v473 = vsub.f32 %v240, %v465
    %v474 = vsub.f32 %v242, %v466
    %vm475 = vcmp.gt.f32.partialorder %v93, 0.0
    %v476 = vsub.f32 1.0, %v471
    %v477 = vsub.f32 1.0, %v472
    %v478 = vsub.f32 1.0, %v473
    %v479 = vsub.f32 1.0, %v474
    %v482 = vunpack.c.l.s4 286326784
    %v483 = vunpack.c.0.s8 %v482
    %v484 = vlaneseq
    %v485 = vshrl.u32 %v484, 7
    %v486 = vsub.s32 %v483, %v485
    %v487 = vrot.slane %v93, %v486
    %v489 = vunpack.c.l.s4 858989090
    %v490 = vunpack.c.0.s8 %v489
    %v491 = vlaneseq
    %v492 = vshrl.u32 %v491, 7
    %v493 = vsub.s32 %v490, %v492
    %v494 = vrot.slane %v93, %v493
    %v496 = vunpack.c.l.s4 1431651396
    %v497 = vunpack.c.0.s8 %v496
    %v498 = vlaneseq
    %v499 = vshrl.u32 %v498, 7
    %v500 = vsub.s32 %v497, %v499
    %v501 = vrot.slane %v93, %v500
    %v503 = vunpack.c.l.s4 2004313702
    %v504 = vunpack.c.0.s8 %v503
    %v505 = vlaneseq
    %v506 = vshrl.u32 %v505, 7
    %v507 = vsub.s32 %v504, %v506
    %v508 = vrot.slane %v93, %v507
    %v513 = vmul.f32 %v476, %v487
    %v514 = vmul.f32 %v477, %v494
    %v515 = vmul.f32 %v478, %v501
    %v516 = vmul.f32 %v479, %v508
    %v522 = vunpack.c.l.s4 1966171168
    %v523 = vunpack.c.0.s8 %v522
    %v524 = vlaneseq
    %v525 = vshrl.u32 %v524, 7
    %v526 = vsub.s32 %v523, %v525
    %v527 = vrot.slane %v513, %v526
    %v529 = vunpack.c.l.s4 1966171168
    %v530 = vunpack.c.0.s8 %v529
    %v531 = vlaneseq
    %v532 = vshrl.u32 %v531, 7
    %v533 = vsub.s32 %v530, %v532
    %v534 = vrot.slane %v514, %v533
    %v536 = vunpack.c.l.s4 1966171168
    %v537 = vunpack.c.0.s8 %v536
    %v538 = vlaneseq
    %v539 = vshrl.u32 %v538, 7
    %v540 = vsub.s32 %v537, %v539
    %v541 = vrot.slane %v515, %v540
    %v543 = vunpack.c.l.s4 1966171168
    %v544 = vunpack.c.0.s8 %v543
    %v545 = vlaneseq
    %v546 = vshrl.u32 %v545, 7
    %v547 = vsub.s32 %v544, %v546
    %v548 = vrot.slane %v516, %v547
    %v549 = vcombine.low %v527, %v534
    %v550 = vcombine.low %v541, %v548
    %v552 = vunpack.c.l.s4 1966171168
    %v553 = vunpack.c.0.s8 %v552
    %v554 = vlaneseq
    %v555 = vshrl.u32 %v554, 7
    %v556 = vsub.s32 %v553, %v555
    %v557 = vrot.slane %v549, %v556
    %v559 = vunpack.c.l.s4 1966171168
    %v560 = vunpack.c.0.s8 %v559
    %v561 = vlaneseq
    %v562 = vshrl.u32 %v561, 7
    %v563 = vsub.s32 %v560, %v562
    %v564 = vrot.slane %v550, %v563
    %v565 = vcombine.high %v557, %v564
    %v567 = vsel %vm475, %v565, 0.0
    %v569 = vunpack.c.l.s4 1983009808
    %v570 = vunpack.c.0.s8 %v569
    %v571 = vlaneseq
    %v572 = vshrl.u32 %v571, 7
    %v573 = vsub.s32 %v570, %v572
    %v574 = vrot.slane %v87, %v573
    %v576 = vunpack.c.l.s4 1983009808
    %v577 = vunpack.c.0.s8 %v576
    %v578 = vlaneseq
    %v579 = vshrl.u32 %v578, 7
    %v580 = vsub.s32 %v577, %v579
    %v581 = vrot.slane %v88, %v580
    %v582 = vcombine.low %v574, %v581
    %v584 = vunpack.c.l.s4 1983009808
    %v585 = vunpack.c.0.s8 %v584
    %v586 = vlaneseq
    %v587 = vshrl.u32 %v586, 7
    %v588 = vsub.s32 %v585, %v587
    %v589 = vrot.slane %v89, %v588
    %v591 = vunpack.c.l.s4 1983009808
    %v592 = vunpack.c.0.s8 %v591
    %v593 = vlaneseq
    %v594 = vshrl.u32 %v593, 7
    %v595 = vsub.s32 %v592, %v594
    %v596 = vrot.slane %v90, %v595
    %v597 = vcombine.low %v589, %v596
    %v600 = vsub.f32 %v91, %v582
    %v601 = vsub.f32 %v92, %v597
    %v604 = vcombine.low %v91, %v91
    %v606 = vunpack.c.l.s4 1983009808
    %v607 = vunpack.c.0.s8 %v606
    %v608 = vlaneseq
    %v609 = vshrl.u32 %v608, 7
    %v610 = vsub.s32 %v607, %v609
    %v611 = vrot.slane %v604, %v610
    %v613 = vunpack.c.l.s4 1983009808
    %v614 = vunpack.c.0.s8 %v613
    %v615 = vlaneseq
    %v616 = vshrl.u32 %v615, 7
    %v617 = vsub.s32 %v614, %v616
    %v618 = vrot.slane %v91, %v617
    %v619 = vcombine.low %v92, %v92
    %v621 = vunpack.c.l.s4 1983009808
    %v622 = vunpack.c.0.s8 %v621
    %v623 = vlaneseq
    %v624 = vshrl.u32 %v623, 7
    %v625 = vsub.s32 %v622, %v624
    %v626 = vrot.slane %v619, %v625
    %v628 = vunpack.c.l.s4 1983009808
    %v629 = vunpack.c.0.s8 %v628
    %v630 = vlaneseq
    %v631 = vshrl.u32 %v630, 7
    %v632 = vsub.s32 %v629, %v631
    %v633 = vrot.slane %v92, %v632
    %v638 = vsub.f32 %v87, %v611
    %v639 = vsub.f32 %v88, %v618
    %v640 = vsub.f32 %v89, %v626
    %v641 = vsub.f32 %v90, %v633
    %v644 = vcombine.high %v600, %v600
    %v646 = vunpack.c.l.s4 1983009808
    %v647 = vunpack.c.0.s8 %v646
    %v648 = vlaneseq
    %v649 = vshrl.u32 %v648, 7
    %v650 = vsub.s32 %v647, %v649
    %v651 = vrot.slane %v600, %v650
    %v653 = vunpack.c.l.s4 1983009808
    %v654 = vunpack.c.0.s8 %v653
    %v655 = vlaneseq
    %v656 = vshrl.u32 %v655, 7
    %v657 = vsub.s32 %v654, %v656
    %v658 = vrot.slane %v644, %v657
    %v659 = vcombine.high %v651, %v651
    %v660 = vcombine.high %v658, %v658
    %v661 = vcombine.high %v601, %v601
    %v663 = vunpack.c.l.s4 1983009808
    %v664 = vunpack.c.0.s8 %v663
    %v665 = vlaneseq
    %v666 = vshrl.u32 %v665, 7
    %v667 = vsub.s32 %v664, %v666
    %v668 = vrot.slane %v601, %v667
    %v670 = vunpack.c.l.s4 1983009808
    %v671 = vunpack.c.0.s8 %v670
    %v672 = vlaneseq
    %v673 = vshrl.u32 %v672, 7
    %v674 = vsub.s32 %v671, %v673
    %v675 = vrot.slane %v661, %v674
    %v676 = vcombine.high %v668, %v668
    %v677 = vcombine.high %v675, %v675
    %v690 = vcombine.high %v638, %v638
    %v691 = vcombine.high %v639, %v639
    %v692 = vcombine.high %v640, %v640
    %v693 = vcombine.high %v641, %v641
    %vm698 = vcmask 1041408
    %v699 = vsel %vm698, %v651, %v638
    %v700 = vsel %vm698, %v659, %v690
    %v701 = vsel %vm698, %v658, %v639
    %v702 = vsel %vm698, %v660, %v691
    %v703 = vsel %vm698, %v668, %v640
    %v704 = vsel %vm698, %v676, %v692
    %v705 = vsel %vm698, %v675, %v641
    %v706 = vsel %vm698, %v677, %v693
    %v707 = vmax.f32 %v699, 0.0
    %v708 = vmax.f32 %v700, 0.0
    %v709 = vmax.f32 %v701, 0.0
    %v710 = vmax.f32 %v702, 0.0
    %v711 = vmax.f32 %v703, 0.0
    %v712 = vmax.f32 %v704, 0.0
    %v713 = vmax.f32 %v705, 0.0
    %v714 = vmax.f32 %v706, 0.0
    %v715 = vmin.f32 %v707, 14.99
    %v716 = vmin.f32 %v708, 14.99
    %v717 = vmin.f32 %v709, 14.99
    %v718 = vmin.f32 %v710, 14.99
    %v719 = vmin.f32 %v711, 14.99
    %v720 = vmin.f32 %v712, 14.99
    %v721 = vmin.f32 %v713, 14.99
    %v722 = vmin.f32 %v714, 14.99
    %v723 = vfloor.f32 %v715
    %v724 = vfloor.f32 %v716
    %v725 = vfloor.f32 %v717
    %v726 = vfloor.f32 %v718
    %v727 = vfloor.f32 %v719
    %v728 = vfloor.f32 %v720
    %v729 = vfloor.f32 %v721
    %v730 = vfloor.f32 %v722
    %v731 = vadd.f32 %v723, 1.0
    %v732 = vadd.f32 %v724, 1.0
    %v733 = vadd.f32 %v725, 1.0
    %v734 = vadd.f32 %v726, 1.0
    %v735 = vadd.f32 %v727, 1.0
    %v736 = vadd.f32 %v728, 1.0
    %v737 = vadd.f32 %v729, 1.0
    %v738 = vadd.f32 %v730, 1.0
    %v739 = vsub.f32 %v731, %v715
    %v740 = vsub.f32 %v732, %v716
    %v741 = vsub.f32 %v733, %v717
    %v742 = vsub.f32 %v734, %v718
    %v743 = vsub.f32 %v735, %v719
    %v744 = vsub.f32 %v736, %v720
    %v745 = vsub.f32 %v737, %v721
    %v746 = vsub.f32 %v738, %v722
    %v747 = vsub.f32 1.0, %v739
    %v748 = vsub.f32 1.0, %v740
    %v749 = vsub.f32 1.0, %v741
    %v750 = vsub.f32 1.0, %v742
    %v751 = vsub.f32 1.0, %v743
    %v752 = vsub.f32 1.0, %v744
    %v753 = vsub.f32 1.0, %v745
    %v754 = vsub.f32 1.0, %v746
    %v755 = vcvt.f32.s32.to.zero.pseudo %v723
    %v756 = vcvt.f32.s32.to.zero.pseudo %v724
    %v757 = vcvt.f32.s32.to.zero.pseudo %v725
    %v758 = vcvt.f32.s32.to.zero.pseudo %v726
    %v759 = vcvt.f32.s32.to.zero.pseudo %v727
    %v760 = vcvt.f32.s32.to.zero.pseudo %v728
    %v761 = vcvt.f32.s32.to.zero.pseudo %v729
    %v762 = vcvt.f32.s32.to.zero.pseudo %v730
    %v763 = vld [vmem:[#allocation2] sm:$0xff]
    %v764 = vld [vmem:[#allocation2 + $0x8] sm:$0xff]
    %v765 = vld [vmem:[#allocation2 + $0x10] sm:$0xff]
    %v766 = vld [vmem:[#allocation2 + $0x18] sm:$0xff]
    %v767 = vld [vmem:[#allocation2 + $0x20] sm:$0xff]
    %v768 = vld [vmem:[#allocation2 + $0x28] sm:$0xff]
    %v769 = vld [vmem:[#allocation2 + $0x30] sm:$0xff]
    %v770 = vld [vmem:[#allocation2 + $0x38] sm:$0xff]
    %v771 = vld [vmem:[#allocation2 + $0x40] sm:$0xff]
    %v772 = vld [vmem:[#allocation2 + $0x48] sm:$0xff]
    %v773 = vld [vmem:[#allocation2 + $0x50] sm:$0xff]
    %v774 = vld [vmem:[#allocation2 + $0x58] sm:$0xff]
    %v775 = vld [vmem:[#allocation2 + $0x60] sm:$0xff]
    %v776 = vld [vmem:[#allocation2 + $0x68] sm:$0xff]
    %v777 = vld [vmem:[#allocation2 + $0x70] sm:$0xff]
    %v778 = vld [vmem:[#allocation2 + $0x78] sm:$0xff]
    %v779 = vld [vmem:[#allocation2 + $0x80] sm:$0xff]
    %v780 = vld [vmem:[#allocation2 + $0x88] sm:$0xff]
    %v781 = vld [vmem:[#allocation2 + $0x90] sm:$0xff]
    %v782 = vld [vmem:[#allocation2 + $0x98] sm:$0xff]
    %v783 = vld [vmem:[#allocation2 + $0xa0] sm:$0xff]
    %v784 = vld [vmem:[#allocation2 + $0xa8] sm:$0xff]
    %v785 = vld [vmem:[#allocation2 + $0xb0] sm:$0xff]
    %v786 = vld [vmem:[#allocation2 + $0xb8] sm:$0xff]
    %v787 = vld [vmem:[#allocation2 + $0xc0] sm:$0xff]
    %v788 = vld [vmem:[#allocation2 + $0xc8] sm:$0xff]
    %v789 = vld [vmem:[#allocation2 + $0xd0] sm:$0xff]
    %v790 = vld [vmem:[#allocation2 + $0xd8] sm:$0xff]
    %v791 = vld [vmem:[#allocation2 + $0xe0] sm:$0xff]
    %v792 = vld [vmem:[#allocation2 + $0xe8] sm:$0xff]
    %v793 = vld [vmem:[#allocation2 + $0xf0] sm:$0xff]
    %v794 = vld [vmem:[#allocation2 + $0xf8] sm:$0xff]
    %v795 = vld [vmem:[#allocation2 + $0x100] sm:$0xff]
    %v796 = vld [vmem:[#allocation2 + $0x108] sm:$0xff]
    %v797 = vld [vmem:[#allocation2 + $0x110] sm:$0xff]
    %v798 = vld [vmem:[#allocation2 + $0x118] sm:$0xff]
    %v799 = vld [vmem:[#allocation2 + $0x120] sm:$0xff]
    %v800 = vld [vmem:[#allocation2 + $0x128] sm:$0xff]
    %v801 = vld [vmem:[#allocation2 + $0x130] sm:$0xff]
    %v802 = vld [vmem:[#allocation2 + $0x138] sm:$0xff]
    %v803 = vld [vmem:[#allocation2 + $0x140] sm:$0xff]
    %v804 = vld [vmem:[#allocation2 + $0x148] sm:$0xff]
    %v805 = vld [vmem:[#allocation2 + $0x150] sm:$0xff]
    %v806 = vld [vmem:[#allocation2 + $0x158] sm:$0xff]
    %v807 = vld [vmem:[#allocation2 + $0x160] sm:$0xff]
    %v808 = vld [vmem:[#allocation2 + $0x168] sm:$0xff]
    %v809 = vld [vmem:[#allocation2 + $0x170] sm:$0xff]
    %v810 = vld [vmem:[#allocation2 + $0x178] sm:$0xff]
    %v811 = vld [vmem:[#allocation2 + $0x180] sm:$0xff]
    %v812 = vld [vmem:[#allocation2 + $0x188] sm:$0xff]
    %v813 = vld [vmem:[#allocation2 + $0x190] sm:$0xff]
    %v814 = vld [vmem:[#allocation2 + $0x198] sm:$0xff]
    %v815 = vld [vmem:[#allocation2 + $0x1a0] sm:$0xff]
    %v816 = vld [vmem:[#allocation2 + $0x1a8] sm:$0xff]
    %v817 = vld [vmem:[#allocation2 + $0x1b0] sm:$0xff]
    %v818 = vld [vmem:[#allocation2 + $0x1b8] sm:$0xff]
    %v819 = vld [vmem:[#allocation2 + $0x1c0] sm:$0xff]
    %v820 = vld [vmem:[#allocation2 + $0x1c8] sm:$0xff]
    %v821 = vld [vmem:[#allocation2 + $0x1d0] sm:$0xff]
    %v822 = vld [vmem:[#allocation2 + $0x1d8] sm:$0xff]
    %v823 = vld [vmem:[#allocation2 + $0x1e0] sm:$0xff]
    %v824 = vld [vmem:[#allocation2 + $0x1e8] sm:$0xff]
    %v825 = vld [vmem:[#allocation2 + $0x1f0] sm:$0xff]
    %v826 = vld [vmem:[#allocation2 + $0x1f8] sm:$0xff]
    %v827 = vmax.f32 %v763, %v771
    %v828 = vrot.slane %v827, 4
    %v829 = vmax.f32 %v827, %v828
    %v830 = vrot.slane %v829, 2
    %v831 = vmax.f32 %v829, %v830
    %v832 = vrot.slane %v831, 1
    %v833 = vmax.f32 %v831, %v832
    %v834 = vmax.f32 %v764, %v772
    %v835 = vrot.slane %v834, 4
    %v836 = vmax.f32 %v834, %v835
    %v837 = vrot.slane %v836, 2
    %v838 = vmax.f32 %v836, %v837
    %v839 = vrot.slane %v838, 1
    %v840 = vmax.f32 %v838, %v839
    %v841 = vmax.f32 %v765, %v773
    %v842 = vrot.slane %v841, 4
    %v843 = vmax.f32 %v841, %v842
    %v844 = vrot.slane %v843, 2
    %v845 = vmax.f32 %v843, %v844
    %v846 = vrot.slane %v845, 1
    %v847 = vmax.f32 %v845, %v846
    %v848 = vmax.f32 %v766, %v774
    %v849 = vrot.slane %v848, 4
    %v850 = vmax.f32 %v848, %v849
    %v851 = vrot.slane %v850, 2
    %v852 = vmax.f32 %v850, %v851
    %v853 = vrot.slane %v852, 1
    %v854 = vmax.f32 %v852, %v853
    %v855 = vmax.f32 %v767, %v775
    %v856 = vrot.slane %v855, 4
    %v857 = vmax.f32 %v855, %v856
    %v858 = vrot.slane %v857, 2
    %v859 = vmax.f32 %v857, %v858
    %v860 = vrot.slane %v859, 1
    %v861 = vmax.f32 %v859, %v860
    %v862 = vmax.f32 %v768, %v776
    %v863 = vrot.slane %v862, 4
    %v864 = vmax.f32 %v862, %v863
    %v865 = vrot.slane %v864, 2
    %v866 = vmax.f32 %v864, %v865
    %v867 = vrot.slane %v866, 1
    %v868 = vmax.f32 %v866, %v867
    %v869 = vmax.f32 %v769, %v777
    %v870 = vrot.slane %v869, 4
    %v871 = vmax.f32 %v869, %v870
    %v872 = vrot.slane %v871, 2
    %v873 = vmax.f32 %v871, %v872
    %v874 = vrot.slane %v873, 1
    %v875 = vmax.f32 %v873, %v874
    %v876 = vmax.f32 %v770, %v778
    %v877 = vrot.slane %v876, 4
    %v878 = vmax.f32 %v876, %v877
    %v879 = vrot.slane %v878, 2
    %v880 = vmax.f32 %v878, %v879
    %v881 = vrot.slane %v880, 1
    %v882 = vmax.f32 %v880, %v881
    %v883 = vmax.f32 %v779, %v787
    %v884 = vrot.slane %v883, 4
    %v885 = vmax.f32 %v883, %v884
    %v886 = vrot.slane %v885, 2
    %v887 = vmax.f32 %v885, %v886
    %v888 = vrot.slane %v887, 1
    %v889 = vmax.f32 %v887, %v888
    %v890 = vmax.f32 %v780, %v788
    %v891 = vrot.slane %v890, 4
    %v892 = vmax.f32 %v890, %v891
    %v893 = vrot.slane %v892, 2
    %v894 = vmax.f32 %v892, %v893
    %v895 = vrot.slane %v894, 1
    %v896 = vmax.f32 %v894, %v895
    %v897 = vmax.f32 %v781, %v789
    %v898 = vrot.slane %v897, 4
    %v899 = vmax.f32 %v897, %v898
    %v900 = vrot.slane %v899, 2
    %v901 = vmax.f32 %v899, %v900
    %v902 = vrot.slane %v901, 1
    %v903 = vmax.f32 %v901, %v902
    %v904 = vmax.f32 %v782, %v790
    %v905 = vrot.slane %v904, 4
    %v906 = vmax.f32 %v904, %v905
    %v907 = vrot.slane %v906, 2
    %v908 = vmax.f32 %v906, %v907
    %v909 = vrot.slane %v908, 1
    %v910 = vmax.f32 %v908, %v909
    %v911 = vmax.f32 %v783, %v791
    %v912 = vrot.slane %v911, 4
    %v913 = vmax.f32 %v911, %v912
    %v914 = vrot.slane %v913, 2
    %v915 = vmax.f32 %v913, %v914
    %v916 = vrot.slane %v915, 1
    %v917 = vmax.f32 %v915, %v916
    %v918 = vmax.f32 %v784, %v792
    %v919 = vrot.slane %v918, 4
    %v920 = vmax.f32 %v918, %v919
    %v921 = vrot.slane %v920, 2
    %v922 = vmax.f32 %v920, %v921
    %v923 = vrot.slane %v922, 1
    %v924 = vmax.f32 %v922, %v923
    %v925 = vmax.f32 %v785, %v793
    %v926 = vrot.slane %v925, 4
    %v927 = vmax.f32 %v925, %v926
    %v928 = vrot.slane %v927, 2
    %v929 = vmax.f32 %v927, %v928
    %v930 = vrot.slane %v929, 1
    %v931 = vmax.f32 %v929, %v930
    %v932 = vmax.f32 %v786, %v794
    %v933 = vrot.slane %v932, 4
    %v934 = vmax.f32 %v932, %v933
    %v935 = vrot.slane %v934, 2
    %v936 = vmax.f32 %v934, %v935
    %v937 = vrot.slane %v936, 1
    %v938 = vmax.f32 %v936, %v937
    %v939 = vmax.f32 %v795, %v803
    %v940 = vrot.slane %v939, 4
    %v941 = vmax.f32 %v939, %v940
    %v942 = vrot.slane %v941, 2
    %v943 = vmax.f32 %v941, %v942
    %v944 = vrot.slane %v943, 1
    %v945 = vmax.f32 %v943, %v944
    %v946 = vmax.f32 %v796, %v804
    %v947 = vrot.slane %v946, 4
    %v948 = vmax.f32 %v946, %v947
    %v949 = vrot.slane %v948, 2
    %v950 = vmax.f32 %v948, %v949
    %v951 = vrot.slane %v950, 1
    %v952 = vmax.f32 %v950, %v951
    %v953 = vmax.f32 %v797, %v805
    %v954 = vrot.slane %v953, 4
    %v955 = vmax.f32 %v953, %v954
    %v956 = vrot.slane %v955, 2
    %v957 = vmax.f32 %v955, %v956
    %v958 = vrot.slane %v957, 1
    %v959 = vmax.f32 %v957, %v958
    %v960 = vmax.f32 %v798, %v806
    %v961 = vrot.slane %v960, 4
    %v962 = vmax.f32 %v960, %v961
    %v963 = vrot.slane %v962, 2
    %v964 = vmax.f32 %v962, %v963
    %v965 = vrot.slane %v964, 1
    %v966 = vmax.f32 %v964, %v965
    %v967 = vmax.f32 %v799, %v807
    %v968 = vrot.slane %v967, 4
    %v969 = vmax.f32 %v967, %v968
    %v970 = vrot.slane %v969, 2
    %v971 = vmax.f32 %v969, %v970
    %v972 = vrot.slane %v971, 1
    %v973 = vmax.f32 %v971, %v972
    %v974 = vmax.f32 %v800, %v808
    %v975 = vrot.slane %v974, 4
    %v976 = vmax.f32 %v974, %v975
    %v977 = vrot.slane %v976, 2
    %v978 = vmax.f32 %v976, %v977
    %v979 = vrot.slane %v978, 1
    %v980 = vmax.f32 %v978, %v979
    %v981 = vmax.f32 %v801, %v809
    %v982 = vrot.slane %v981, 4
    %v983 = vmax.f32 %v981, %v982
    %v984 = vrot.slane %v983, 2
    %v985 = vmax.f32 %v983, %v984
    %v986 = vrot.slane %v985, 1
    %v987 = vmax.f32 %v985, %v986
    %v988 = vmax.f32 %v802, %v810
    %v989 = vrot.slane %v988, 4
    %v990 = vmax.f32 %v988, %v989
    %v991 = vrot.slane %v990, 2
    %v992 = vmax.f32 %v990, %v991
    %v993 = vrot.slane %v992, 1
    %v994 = vmax.f32 %v992, %v993
    %v995 = vmax.f32 %v811, %v819
    %v996 = vrot.slane %v995, 4
    %v997 = vmax.f32 %v995, %v996
    %v998 = vrot.slane %v997, 2
    %v999 = vmax.f32 %v997, %v998
    %v1000 = vrot.slane %v999, 1
    %v1001 = vmax.f32 %v999, %v1000
    %v1002 = vmax.f32 %v812, %v820
    %v1003 = vrot.slane %v1002, 4
    %v1004 = vmax.f32 %v1002, %v1003
    %v1005 = vrot.slane %v1004, 2
    %v1006 = vmax.f32 %v1004, %v1005
    %v1007 = vrot.slane %v1006, 1
    %v1008 = vmax.f32 %v1006, %v1007
    %v1009 = vmax.f32 %v813, %v821
    %v1010 = vrot.slane %v1009, 4
    %v1011 = vmax.f32 %v1009, %v1010
    %v1012 = vrot.slane %v1011, 2
    %v1013 = vmax.f32 %v1011, %v1012
    %v1014 = vrot.slane %v1013, 1
    %v1015 = vmax.f32 %v1013, %v1014
    %v1016 = vmax.f32 %v814, %v822
    %v1017 = vrot.slane %v1016, 4
    %v1018 = vmax.f32 %v1016, %v1017
    %v1019 = vrot.slane %v1018, 2
    %v1020 = vmax.f32 %v1018, %v1019
    %v1021 = vrot.slane %v1020, 1
    %v1022 = vmax.f32 %v1020, %v1021
    %v1023 = vmax.f32 %v815, %v823
    %v1024 = vrot.slane %v1023, 4
    %v1025 = vmax.f32 %v1023, %v1024
    %v1026 = vrot.slane %v1025, 2
    %v1027 = vmax.f32 %v1025, %v1026
    %v1028 = vrot.slane %v1027, 1
    %v1029 = vmax.f32 %v1027, %v1028
    %v1030 = vmax.f32 %v816, %v824
    %v1031 = vrot.slane %v1030, 4
    %v1032 = vmax.f32 %v1030, %v1031
    %v1033 = vrot.slane %v1032, 2
    %v1034 = vmax.f32 %v1032, %v1033
    %v1035 = vrot.slane %v1034, 1
    %v1036 = vmax.f32 %v1034, %v1035
    %v1037 = vmax.f32 %v817, %v825
    %v1038 = vrot.slane %v1037, 4
    %v1039 = vmax.f32 %v1037, %v1038
    %v1040 = vrot.slane %v1039, 2
    %v1041 = vmax.f32 %v1039, %v1040
    %v1042 = vrot.slane %v1041, 1
    %v1043 = vmax.f32 %v1041, %v1042
    %v1044 = vmax.f32 %v818, %v826
    %v1045 = vrot.slane %v1044, 4
    %v1046 = vmax.f32 %v1044, %v1045
    %v1047 = vrot.slane %v1046, 2
    %v1048 = vmax.f32 %v1046, %v1047
    %v1049 = vrot.slane %v1048, 1
    %v1050 = vmax.f32 %v1048, %v1049
    %v1051 = vsub.f32 %v763, %v833
    %v1052 = vsub.f32 %v764, %v840
    %v1053 = vsub.f32 %v765, %v847
    %v1054 = vsub.f32 %v766, %v854
    %v1055 = vsub.f32 %v767, %v861
    %v1056 = vsub.f32 %v768, %v868
    %v1057 = vsub.f32 %v769, %v875
    %v1058 = vsub.f32 %v770, %v882
    %v1059 = vsub.f32 %v771, %v833
    %v1060 = vsub.f32 %v772, %v840
    %v1061 = vsub.f32 %v773, %v847
    %v1062 = vsub.f32 %v774, %v854
    %v1063 = vsub.f32 %v775, %v861
    %v1064 = vsub.f32 %v776, %v868
    %v1065 = vsub.f32 %v777, %v875
    %v1066 = vsub.f32 %v778, %v882
    %v1067 = vsub.f32 %v779, %v889
    %v1068 = vsub.f32 %v780, %v896
    %v1069 = vsub.f32 %v781, %v903
    %v1070 = vsub.f32 %v782, %v910
    %v1071 = vsub.f32 %v783, %v917
    %v1072 = vsub.f32 %v784, %v924
    %v1073 = vsub.f32 %v785, %v931
    %v1074 = vsub.f32 %v786, %v938
    %v1075 = vsub.f32 %v787, %v889
    %v1076 = vsub.f32 %v788, %v896
    %v1077 = vsub.f32 %v789, %v903
    %v1078 = vsub.f32 %v790, %v910
    %v1079 = vsub.f32 %v791, %v917
    %v1080 = vsub.f32 %v792, %v924
    %v1081 = vsub.f32 %v793, %v931
    %v1082 = vsub.f32 %v794, %v938
    %v1083 = vsub.f32 %v795, %v945
    %v1084 = vsub.f32 %v796, %v952
    %v1085 = vsub.f32 %v797, %v959
    %v1086 = vsub.f32 %v798, %v966
    %v1087 = vsub.f32 %v799, %v973
    %v1088 = vsub.f32 %v800, %v980
    %v1089 = vsub.f32 %v801, %v987
    %v1090 = vsub.f32 %v802, %v994
    %v1091 = vsub.f32 %v803, %v945
    %v1092 = vsub.f32 %v804, %v952
    %v1093 = vsub.f32 %v805, %v959
    %v1094 = vsub.f32 %v806, %v966
    %v1095 = vsub.f32 %v807, %v973
    %v1096 = vsub.f32 %v808, %v980
    %v1097 = vsub.f32 %v809, %v987
    %v1098 = vsub.f32 %v810, %v994
    %v1099 = vsub.f32 %v811, %v1001
    %v1100 = vsub.f32 %v812, %v1008
    %v1101 = vsub.f32 %v813, %v1015
    %v1102 = vsub.f32 %v814, %v1022
    %v1103 = vsub.f32 %v815, %v1029
    %v1104 = vsub.f32 %v816, %v1036
    %v1105 = vsub.f32 %v817, %v1043
    %v1106 = vsub.f32 %v818, %v1050
    %v1107 = vsub.f32 %v819, %v1001
    %v1108 = vsub.f32 %v820, %v1008
    %v1109 = vsub.f32 %v821, %v1015
    %v1110 = vsub.f32 %v822, %v1022
    %v1111 = vsub.f32 %v823, %v1029
    %v1112 = vsub.f32 %v824, %v1036
    %v1113 = vsub.f32 %v825, %v1043
    %v1114 = vsub.f32 %v826, %v1050
    %v1115 = vmul.f32 %v1051, 1.442695
    %v1116 = vpow.pop %v1115
    %v1117 = vmul.f32 %v1052, 1.442695
    %v1118 = vpow.pop %v1117
    %v1119 = vmul.f32 %v1053, 1.442695
    %v1120 = vpow.pop %v1119
    %v1121 = vmul.f32 %v1054, 1.442695
    %v1122 = vpow.pop %v1121
    %v1123 = vmul.f32 %v1055, 1.442695
    %v1124 = vpow.pop %v1123
    %v1125 = vmul.f32 %v1056, 1.442695
    %v1126 = vpow.pop %v1125
    %v1127 = vmul.f32 %v1057, 1.442695
    %v1128 = vpow.pop %v1127
    %v1129 = vmul.f32 %v1058, 1.442695
    %v1130 = vpow.pop %v1129
    %v1131 = vmul.f32 %v1059, 1.442695
    %v1132 = vpow.pop %v1131
    %v1133 = vmul.f32 %v1060, 1.442695
    %v1134 = vpow.pop %v1133
    %v1135 = vmul.f32 %v1061, 1.442695
    %v1136 = vpow.pop %v1135
    %v1137 = vmul.f32 %v1062, 1.442695
    %v1138 = vpow.pop %v1137
    %v1139 = vmul.f32 %v1063, 1.442695
    %v1140 = vpow.pop %v1139
    %v1141 = vmul.f32 %v1064, 1.442695
    %v1142 = vpow.pop %v1141
    %v1143 = vmul.f32 %v1065, 1.442695
    %v1144 = vpow.pop %v1143
    %v1145 = vmul.f32 %v1066, 1.442695
    %v1146 = vpow.pop %v1145
    %v1147 = vmul.f32 %v1067, 1.442695
    %v1148 = vpow.pop %v1147
    %v1149 = vmul.f32 %v1068, 1.442695
    %v1150 = vpow.pop %v1149
    %v1151 = vmul.f32 %v1069, 1.442695
    %v1152 = vpow.pop %v1151
    %v1153 = vmul.f32 %v1070, 1.442695
    %v1154 = vpow.pop %v1153
    %v1155 = vmul.f32 %v1071, 1.442695
    %v1156 = vpow.pop %v1155
    %v1157 = vmul.f32 %v1072, 1.442695
    %v1158 = vpow.pop %v1157
    %v1159 = vmul.f32 %v1073, 1.442695
    %v1160 = vpow.pop %v1159
    %v1161 = vmul.f32 %v1074, 1.442695
    %v1162 = vpow.pop %v1161
    %v1163 = vmul.f32 %v1075, 1.442695
    %v1164 = vpow.pop %v1163
    %v1165 = vmul.f32 %v1076, 1.442695
    %v1166 = vpow.pop %v1165
    %v1167 = vmul.f32 %v1077, 1.442695
    %v1168 = vpow.pop %v1167
    %v1169 = vmul.f32 %v1078, 1.442695
    %v1170 = vpow.pop %v1169
    %v1171 = vmul.f32 %v1079, 1.442695
    %v1172 = vpow.pop %v1171
    %v1173 = vmul.f32 %v1080, 1.442695
    %v1174 = vpow.pop %v1173
    %v1175 = vmul.f32 %v1081, 1.442695
    %v1176 = vpow.pop %v1175
    %v1177 = vmul.f32 %v1082, 1.442695
    %v1178 = vpow.pop %v1177
    %v1179 = vmul.f32 %v1083, 1.442695
    %v1180 = vpow.pop %v1179
    %v1181 = vmul.f32 %v1084, 1.442695
    %v1182 = vpow.pop %v1181
    %v1183 = vmul.f32 %v1085, 1.442695
    %v1184 = vpow.pop %v1183
    %v1185 = vmul.f32 %v1086, 1.442695
    %v1186 = vpow.pop %v1185
    %v1187 = vmul.f32 %v1087, 1.442695
    %v1188 = vpow.pop %v1187
    %v1189 = vmul.f32 %v1088, 1.442695
    %v1190 = vpow.pop %v1189
    %v1191 = vmul.f32 %v1089, 1.442695
    %v1192 = vpow.pop %v1191
    %v1193 = vmul.f32 %v1090, 1.442695
    %v1194 = vpow.pop %v1193
    %v1195 = vmul.f32 %v1091, 1.442695
    %v1196 = vpow.pop %v1195
    %v1197 = vmul.f32 %v1092, 1.442695
    %v1198 = vpow.pop %v1197
    %v1199 = vmul.f32 %v1093, 1.442695
    %v1200 = vpow.pop %v1199
    %v1201 = vmul.f32 %v1094, 1.442695
    %v1202 = vpow.pop %v1201
    %v1203 = vmul.f32 %v1095, 1.442695
    %v1204 = vpow.pop %v1203
    %v1205 = vmul.f32 %v1096, 1.442695
    %v1206 = vpow.pop %v1205
    %v1207 = vmul.f32 %v1097, 1.442695
    %v1208 = vpow.pop %v1207
    %v1209 = vmul.f32 %v1098, 1.442695
    %v1210 = vpow.pop %v1209
    %v1211 = vmul.f32 %v1099, 1.442695
    %v1212 = vpow.pop %v1211
    %v1213 = vmul.f32 %v1100, 1.442695
    %v1214 = vpow.pop %v1213
    %v1215 = vmul.f32 %v1101, 1.442695
    %v1216 = vpow.pop %v1215
    %v1217 = vmul.f32 %v1102, 1.442695
    %v1218 = vpow.pop %v1217
    %v1219 = vmul.f32 %v1103, 1.442695
    %v1220 = vpow.pop %v1219
    %v1221 = vmul.f32 %v1104, 1.442695
    %v1222 = vpow.pop %v1221
    %v1223 = vmul.f32 %v1105, 1.442695
    %v1224 = vpow.pop %v1223
    %v1225 = vmul.f32 %v1106, 1.442695
    %v1226 = vpow.pop %v1225
    %v1227 = vmul.f32 %v1107, 1.442695
    %v1228 = vpow.pop %v1227
    %v1229 = vmul.f32 %v1108, 1.442695
    %v1230 = vpow.pop %v1229
    %v1231 = vmul.f32 %v1109, 1.442695
    %v1232 = vpow.pop %v1231
    %v1233 = vmul.f32 %v1110, 1.442695
    %v1234 = vpow.pop %v1233
    %v1235 = vmul.f32 %v1111, 1.442695
    %v1236 = vpow.pop %v1235
    %v1237 = vmul.f32 %v1112, 1.442695
    %v1238 = vpow.pop %v1237
    %v1239 = vmul.f32 %v1113, 1.442695
    %v1240 = vpow.pop %v1239
    %v1241 = vmul.f32 %v1114, 1.442695
    %v1242 = vpow.pop %v1241
    %v1243 = vadd.f32 %v1116, %v1132
    %v1244 = vrot.slane %v1243, 4
    %v1245 = vadd.f32 %v1243, %v1244
    %v1246 = vrot.slane %v1245, 2
    %v1247 = vadd.f32 %v1245, %v1246
    %v1248 = vrot.slane %v1247, 1
    %v1249 = vadd.f32 %v1247, %v1248
    %v1250 = vadd.f32 %v1118, %v1134
    %v1251 = vrot.slane %v1250, 4
    %v1252 = vadd.f32 %v1250, %v1251
    %v1253 = vrot.slane %v1252, 2
    %v1254 = vadd.f32 %v1252, %v1253
    %v1255 = vrot.slane %v1254, 1
    %v1256 = vadd.f32 %v1254, %v1255
    %v1257 = vadd.f32 %v1120, %v1136
    %v1258 = vrot.slane %v1257, 4
    %v1259 = vadd.f32 %v1257, %v1258
    %v1260 = vrot.slane %v1259, 2
    %v1261 = vadd.f32 %v1259, %v1260
    %v1262 = vrot.slane %v1261, 1
    %v1263 = vadd.f32 %v1261, %v1262
    %v1264 = vadd.f32 %v1122, %v1138
    %v1265 = vrot.slane %v1264, 4
    %v1266 = vadd.f32 %v1264, %v1265
    %v1267 = vrot.slane %v1266, 2
    %v1268 = vadd.f32 %v1266, %v1267
    %v1269 = vrot.slane %v1268, 1
    %v1270 = vadd.f32 %v1268, %v1269
    %v1271 = vadd.f32 %v1124, %v1140
    %v1272 = vrot.slane %v1271, 4
    %v1273 = vadd.f32 %v1271, %v1272
    %v1274 = vrot.slane %v1273, 2
    %v1275 = vadd.f32 %v1273, %v1274
    %v1276 = vrot.slane %v1275, 1
    %v1277 = vadd.f32 %v1275, %v1276
    %v1278 = vadd.f32 %v1126, %v1142
    %v1279 = vrot.slane %v1278, 4
    %v1280 = vadd.f32 %v1278, %v1279
    %v1281 = vrot.slane %v1280, 2
    %v1282 = vadd.f32 %v1280, %v1281
    %v1283 = vrot.slane %v1282, 1
    %v1284 = vadd.f32 %v1282, %v1283
    %v1285 = vadd.f32 %v1128, %v1144
    %v1286 = vrot.slane %v1285, 4
    %v1287 = vadd.f32 %v1285, %v1286
    %v1288 = vrot.slane %v1287, 2
    %v1289 = vadd.f32 %v1287, %v1288
    %v1290 = vrot.slane %v1289, 1
    %v1291 = vadd.f32 %v1289, %v1290
    %v1292 = vadd.f32 %v1130, %v1146
    %v1293 = vrot.slane %v1292, 4
    %v1294 = vadd.f32 %v1292, %v1293
    %v1295 = vrot.slane %v1294, 2
    %v1296 = vadd.f32 %v1294, %v1295
    %v1297 = vrot.slane %v1296, 1
    %v1298 = vadd.f32 %v1296, %v1297
    %v1299 = vadd.f32 %v1148, %v1164
    %v1300 = vrot.slane %v1299, 4
    %v1301 = vadd.f32 %v1299, %v1300
    %v1302 = vrot.slane %v1301, 2
    %v1303 = vadd.f32 %v1301, %v1302
    %v1304 = vrot.slane %v1303, 1
    %v1305 = vadd.f32 %v1303, %v1304
    %v1306 = vadd.f32 %v1150, %v1166
    %v1307 = vrot.slane %v1306, 4
    %v1308 = vadd.f32 %v1306, %v1307
    %v1309 = vrot.slane %v1308, 2
    %v1310 = vadd.f32 %v1308, %v1309
    %v1311 = vrot.slane %v1310, 1
    %v1312 = vadd.f32 %v1310, %v1311
    %v1313 = vadd.f32 %v1152, %v1168
    %v1314 = vrot.slane %v1313, 4
    %v1315 = vadd.f32 %v1313, %v1314
    %v1316 = vrot.slane %v1315, 2
    %v1317 = vadd.f32 %v1315, %v1316
    %v1318 = vrot.slane %v1317, 1
    %v1319 = vadd.f32 %v1317, %v1318
    %v1320 = vadd.f32 %v1154, %v1170
    %v1321 = vrot.slane %v1320, 4
    %v1322 = vadd.f32 %v1320, %v1321
    %v1323 = vrot.slane %v1322, 2
    %v1324 = vadd.f32 %v1322, %v1323
    %v1325 = vrot.slane %v1324, 1
    %v1326 = vadd.f32 %v1324, %v1325
    %v1327 = vadd.f32 %v1156, %v1172
    %v1328 = vrot.slane %v1327, 4
    %v1329 = vadd.f32 %v1327, %v1328
    %v1330 = vrot.slane %v1329, 2
    %v1331 = vadd.f32 %v1329, %v1330
    %v1332 = vrot.slane %v1331, 1
    %v1333 = vadd.f32 %v1331, %v1332
    %v1334 = vadd.f32 %v1158, %v1174
    %v1335 = vrot.slane %v1334, 4
    %v1336 = vadd.f32 %v1334, %v1335
    %v1337 = vrot.slane %v1336, 2
    %v1338 = vadd.f32 %v1336, %v1337
    %v1339 = vrot.slane %v1338, 1
    %v1340 = vadd.f32 %v1338, %v1339
    %v1341 = vadd.f32 %v1160, %v1176
    %v1342 = vrot.slane %v1341, 4
    %v1343 = vadd.f32 %v1341, %v1342
    %v1344 = vrot.slane %v1343, 2
    %v1345 = vadd.f32 %v1343, %v1344
    %v1346 = vrot.slane %v1345, 1
    %v1347 = vadd.f32 %v1345, %v1346
    %v1348 = vadd.f32 %v1162, %v1178
    %v1349 = vrot.slane %v1348, 4
    %v1350 = vadd.f32 %v1348, %v1349
    %v1351 = vrot.slane %v1350, 2
    %v1352 = vadd.f32 %v1350, %v1351
    %v1353 = vrot.slane %v1352, 1
    %v1354 = vadd.f32 %v1352, %v1353
    %v1355 = vadd.f32 %v1180, %v1196
    %v1356 = vrot.slane %v1355, 4
    %v1357 = vadd.f32 %v1355, %v1356
    %v1358 = vrot.slane %v1357, 2
    %v1359 = vadd.f32 %v1357, %v1358
    %v1360 = vrot.slane %v1359, 1
    %v1361 = vadd.f32 %v1359, %v1360
    %v1362 = vadd.f32 %v1182, %v1198
    %v1363 = vrot.slane %v1362, 4
    %v1364 = vadd.f32 %v1362, %v1363
    %v1365 = vrot.slane %v1364, 2
    %v1366 = vadd.f32 %v1364, %v1365
    %v1367 = vrot.slane %v1366, 1
    %v1368 = vadd.f32 %v1366, %v1367
    %v1369 = vadd.f32 %v1184, %v1200
    %v1370 = vrot.slane %v1369, 4
    %v1371 = vadd.f32 %v1369, %v1370
    %v1372 = vrot.slane %v1371, 2
    %v1373 = vadd.f32 %v1371, %v1372
    %v1374 = vrot.slane %v1373, 1
    %v1375 = vadd.f32 %v1373, %v1374
    %v1376 = vadd.f32 %v1186, %v1202
    %v1377 = vrot.slane %v1376, 4
    %v1378 = vadd.f32 %v1376, %v1377
    %v1379 = vrot.slane %v1378, 2
    %v1380 = vadd.f32 %v1378, %v1379
    %v1381 = vrot.slane %v1380, 1
    %v1382 = vadd.f32 %v1380, %v1381
    %v1383 = vadd.f32 %v1188, %v1204
    %v1384 = vrot.slane %v1383, 4
    %v1385 = vadd.f32 %v1383, %v1384
    %v1386 = vrot.slane %v1385, 2
    %v1387 = vadd.f32 %v1385, %v1386
    %v1388 = vrot.slane %v1387, 1
    %v1389 = vadd.f32 %v1387, %v1388
    %v1390 = vadd.f32 %v1190, %v1206
    %v1391 = vrot.slane %v1390, 4
    %v1392 = vadd.f32 %v1390, %v1391
    %v1393 = vrot.slane %v1392, 2
    %v1394 = vadd.f32 %v1392, %v1393
    %v1395 = vrot.slane %v1394, 1
    %v1396 = vadd.f32 %v1394, %v1395
    %v1397 = vadd.f32 %v1192, %v1208
    %v1398 = vrot.slane %v1397, 4
    %v1399 = vadd.f32 %v1397, %v1398
    %v1400 = vrot.slane %v1399, 2
    %v1401 = vadd.f32 %v1399, %v1400
    %v1402 = vrot.slane %v1401, 1
    %v1403 = vadd.f32 %v1401, %v1402
    %v1404 = vadd.f32 %v1194, %v1210
    %v1405 = vrot.slane %v1404, 4
    %v1406 = vadd.f32 %v1404, %v1405
    %v1407 = vrot.slane %v1406, 2
    %v1408 = vadd.f32 %v1406, %v1407
    %v1409 = vrot.slane %v1408, 1
    %v1410 = vadd.f32 %v1408, %v1409
    %v1411 = vadd.f32 %v1212, %v1228
    %v1412 = vrot.slane %v1411, 4
    %v1413 = vadd.f32 %v1411, %v1412
    %v1414 = vrot.slane %v1413, 2
    %v1415 = vadd.f32 %v1413, %v1414
    %v1416 = vrot.slane %v1415, 1
    %v1417 = vadd.f32 %v1415, %v1416
    %v1418 = vadd.f32 %v1214, %v1230
    %v1419 = vrot.slane %v1418, 4
    %v1420 = vadd.f32 %v1418, %v1419
    %v1421 = vrot.slane %v1420, 2
    %v1422 = vadd.f32 %v1420, %v1421
    %v1423 = vrot.slane %v1422, 1
    %v1424 = vadd.f32 %v1422, %v1423
    %v1425 = vadd.f32 %v1216, %v1232
    %v1426 = vrot.slane %v1425, 4
    %v1427 = vadd.f32 %v1425, %v1426
    %v1428 = vrot.slane %v1427, 2
    %v1429 = vadd.f32 %v1427, %v1428
    %v1430 = vrot.slane %v1429, 1
    %v1431 = vadd.f32 %v1429, %v1430
    %v1432 = vadd.f32 %v1218, %v1234
    %v1433 = vrot.slane %v1432, 4
    %v1434 = vadd.f32 %v1432, %v1433
    %v1435 = vrot.slane %v1434, 2
    %v1436 = vadd.f32 %v1434, %v1435
    %v1437 = vrot.slane %v1436, 1
    %v1438 = vadd.f32 %v1436, %v1437
    %v1439 = vadd.f32 %v1220, %v1236
    %v1440 = vrot.slane %v1439, 4
    %v1441 = vadd.f32 %v1439, %v1440
    %v1442 = vrot.slane %v1441, 2
    %v1443 = vadd.f32 %v1441, %v1442
    %v1444 = vrot.slane %v1443, 1
    %v1445 = vadd.f32 %v1443, %v1444
    %v1446 = vadd.f32 %v1222, %v1238
    %v1447 = vrot.slane %v1446, 4
    %v1448 = vadd.f32 %v1446, %v1447
    %v1449 = vrot.slane %v1448, 2
    %v1450 = vadd.f32 %v1448, %v1449
    %v1451 = vrot.slane %v1450, 1
    %v1452 = vadd.f32 %v1450, %v1451
    %v1453 = vadd.f32 %v1224, %v1240
    %v1454 = vrot.slane %v1453, 4
    %v1455 = vadd.f32 %v1453, %v1454
    %v1456 = vrot.slane %v1455, 2
    %v1457 = vadd.f32 %v1455, %v1456
    %v1458 = vrot.slane %v1457, 1
    %v1459 = vadd.f32 %v1457, %v1458
    %v1460 = vadd.f32 %v1226, %v1242
    %v1461 = vrot.slane %v1460, 4
    %v1462 = vadd.f32 %v1460, %v1461
    %v1463 = vrot.slane %v1462, 2
    %v1464 = vadd.f32 %v1462, %v1463
    %v1465 = vrot.slane %v1464, 1
    %v1466 = vadd.f32 %v1464, %v1465
    %v1467 = vlog2.pop %v1249
    %v1468 = vmul.f32 %v1467, 0.6931472
    %v1469 = vlog2.pop %v1256
    %v1470 = vmul.f32 %v1469, 0.6931472
    %v1471 = vlog2.pop %v1263
    %v1472 = vmul.f32 %v1471, 0.6931472
    %v1473 = vlog2.pop %v1270
    %v1474 = vmul.f32 %v1473, 0.6931472
    %v1475 = vlog2.pop %v1277
    %v1476 = vmul.f32 %v1475, 0.6931472
    %v1477 = vlog2.pop %v1284
    %v1478 = vmul.f32 %v1477, 0.6931472
    %v1479 = vlog2.pop %v1291
    %v1480 = vmul.f32 %v1479, 0.6931472
    %v1481 = vlog2.pop %v1298
    %v1482 = vmul.f32 %v1481, 0.6931472
    %v1483 = vlog2.pop %v1305
    %v1484 = vmul.f32 %v1483, 0.6931472
    %v1485 = vlog2.pop %v1312
    %v1486 = vmul.f32 %v1485, 0.6931472
    %v1487 = vlog2.pop %v1319
    %v1488 = vmul.f32 %v1487, 0.6931472
    %v1489 = vlog2.pop %v1326
    %v1490 = vmul.f32 %v1489, 0.6931472
    %v1491 = vlog2.pop %v1333
    %v1492 = vmul.f32 %v1491, 0.6931472
    %v1493 = vlog2.pop %v1340
    %v1494 = vmul.f32 %v1493, 0.6931472
    %v1495 = vlog2.pop %v1347
    %v1496 = vmul.f32 %v1495, 0.6931472
    %v1497 = vlog2.pop %v1354
    %v1498 = vmul.f32 %v1497, 0.6931472
    %v1499 = vlog2.pop %v1361
    %v1500 = vmul.f32 %v1499, 0.6931472
    %v1501 = vlog2.pop %v1368
    %v1502 = vmul.f32 %v1501, 0.6931472
    %v1503 = vlog2.pop %v1375
    %v1504 = vmul.f32 %v1503, 0.6931472
    %v1505 = vlog2.pop %v1382
    %v1506 = vmul.f32 %v1505, 0.6931472
    %v1507 = vlog2.pop %v1389
    %v1508 = vmul.f32 %v1507, 0.6931472
    %v1509 = vlog2.pop %v1396
    %v1510 = vmul.f32 %v1509, 0.6931472
    %v1511 = vlog2.pop %v1403
    %v1512 = vmul.f32 %v1511, 0.6931472
    %v1513 = vlog2.pop %v1410
    %v1514 = vmul.f32 %v1513, 0.6931472
    %v1515 = vlog2.pop %v1417
    %v1516 = vmul.f32 %v1515, 0.6931472
    %v1517 = vlog2.pop %v1424
    %v1518 = vmul.f32 %v1517, 0.6931472
    %v1519 = vlog2.pop %v1431
    %v1520 = vmul.f32 %v1519, 0.6931472
    %v1521 = vlog2.pop %v1438
    %v1522 = vmul.f32 %v1521, 0.6931472
    %v1523 = vlog2.pop %v1445
    %v1524 = vmul.f32 %v1523, 0.6931472
    %v1525 = vlog2.pop %v1452
    %v1526 = vmul.f32 %v1525, 0.6931472
    %v1527 = vlog2.pop %v1459
    %v1528 = vmul.f32 %v1527, 0.6931472
    %v1529 = vlog2.pop %v1466
    %v1530 = vmul.f32 %v1529, 0.6931472
    %v1531 = vadd.f32 %v833, %v1468
    %v1532 = vadd.f32 %v840, %v1470
    %v1533 = vadd.f32 %v847, %v1472
    %v1534 = vadd.f32 %v854, %v1474
    %v1535 = vadd.f32 %v861, %v1476
    %v1536 = vadd.f32 %v868, %v1478
    %v1537 = vadd.f32 %v875, %v1480
    %v1538 = vadd.f32 %v882, %v1482
    %v1539 = vadd.f32 %v889, %v1484
    %v1540 = vadd.f32 %v896, %v1486
    %v1541 = vadd.f32 %v903, %v1488
    %v1542 = vadd.f32 %v910, %v1490
    %v1543 = vadd.f32 %v917, %v1492
    %v1544 = vadd.f32 %v924, %v1494
    %v1545 = vadd.f32 %v931, %v1496
    %v1546 = vadd.f32 %v938, %v1498
    %v1547 = vadd.f32 %v945, %v1500
    %v1548 = vadd.f32 %v952, %v1502
    %v1549 = vadd.f32 %v959, %v1504
    %v1550 = vadd.f32 %v966, %v1506
    %v1551 = vadd.f32 %v973, %v1508
    %v1552 = vadd.f32 %v980, %v1510
    %v1553 = vadd.f32 %v987, %v1512
    %v1554 = vadd.f32 %v994, %v1514
    %v1555 = vadd.f32 %v1001, %v1516
    %v1556 = vadd.f32 %v1008, %v1518
    %v1557 = vadd.f32 %v1015, %v1520
    %v1558 = vadd.f32 %v1022, %v1522
    %v1559 = vadd.f32 %v1029, %v1524
    %v1560 = vadd.f32 %v1036, %v1526
    %v1561 = vadd.f32 %v1043, %v1528
    %v1562 = vadd.f32 %v1050, %v1530
    %v1563 = vlaneseq
    %v1564 = vshrl.u32 %v1563, 7
    %v1565 = vadd.s32 %v1564, 8
    %v1566 = vcombine.low %v755, %v756
    %v1567 = vcombine.low %v757, %v758
    %v1568 = vcombine.low %v759, %v760
    %v1569 = vcombine.low %v761, %v762
    %v1571 = vunpack.c.l.s4 1966171168
    %v1572 = vunpack.c.0.s8 %v1571
    %v1573 = vlaneseq
    %v1574 = vshrl.u32 %v1573, 7
    %v1575 = vsub.s32 %v1572, %v1574
    %v1576 = vrot.slane %v1566, %v1575
    %v1578 = vunpack.c.l.s4 1966171168
    %v1579 = vunpack.c.0.s8 %v1578
    %v1580 = vlaneseq
    %v1581 = vshrl.u32 %v1580, 7
    %v1582 = vsub.s32 %v1579, %v1581
    %v1583 = vrot.slane %v1567, %v1582
    %v1585 = vunpack.c.l.s4 1966171168
    %v1586 = vunpack.c.0.s8 %v1585
    %v1587 = vlaneseq
    %v1588 = vshrl.u32 %v1587, 7
    %v1589 = vsub.s32 %v1586, %v1588
    %v1590 = vrot.slane %v1568, %v1589
    %v1592 = vunpack.c.l.s4 1966171168
    %v1593 = vunpack.c.0.s8 %v1592
    %v1594 = vlaneseq
    %v1595 = vshrl.u32 %v1594, 7
    %v1596 = vsub.s32 %v1593, %v1595
    %v1597 = vrot.slane %v1569, %v1596
    %v1598 = vcombine.low %v1576, %v1583
    %v1599 = vcombine.high %v1576, %v1583
    %v1600 = vcombine.low %v1590, %v1597
    %v1601 = vcombine.high %v1590, %v1597
    %v1603 = vunpack.c.l.s4 1966171168
    %v1604 = vunpack.c.0.s8 %v1603
    %v1605 = vlaneseq
    %v1606 = vshrl.u32 %v1605, 7
    %v1607 = vsub.s32 %v1604, %v1606
    %v1608 = vrot.slane %v1598, %v1607
    %v1610 = vunpack.c.l.s4 1966171168
    %v1611 = vunpack.c.0.s8 %v1610
    %v1612 = vlaneseq
    %v1613 = vshrl.u32 %v1612, 7
    %v1614 = vsub.s32 %v1611, %v1613
    %v1615 = vrot.slane %v1599, %v1614
    %v1617 = vunpack.c.l.s4 1966171168
    %v1618 = vunpack.c.0.s8 %v1617
    %v1619 = vlaneseq
    %v1620 = vshrl.u32 %v1619, 7
    %v1621 = vsub.s32 %v1618, %v1620
    %v1622 = vrot.slane %v1600, %v1621
    %v1624 = vunpack.c.l.s4 1966171168
    %v1625 = vunpack.c.0.s8 %v1624
    %v1626 = vlaneseq
    %v1627 = vshrl.u32 %v1626, 7
    %v1628 = vsub.s32 %v1625, %v1627
    %v1629 = vrot.slane %v1601, %v1628
    %v1630 = vcombine.low %v1608, %v1622
    %v1631 = vcombine.high %v1608, %v1622
    %v1632 = vcombine.low %v1615, %v1629
    %v1633 = vcombine.high %v1615, %v1629
    %v1634 = vlaneseq
    %v1635 = vshrl.u32 %v1634, 7
    %v1636 = vsub.s32 0, %v1635
    %v1637 = vrot.slane %v1630, %v1636
    %v1638 = vlaneseq
    %v1639 = vshrl.u32 %v1638, 7
    %v1640 = vsub.s32 1, %v1639
    %v1641 = vrot.slane %v1630, %v1640
    %v1642 = vlaneseq
    %v1643 = vshrl.u32 %v1642, 7
    %v1644 = vsub.s32 2, %v1643
    %v1645 = vrot.slane %v1630, %v1644
    %v1646 = vlaneseq
    %v1647 = vshrl.u32 %v1646, 7
    %v1648 = vsub.s32 3, %v1647
    %v1649 = vrot.slane %v1630, %v1648
    %v1650 = vlaneseq
    %v1651 = vshrl.u32 %v1650, 7
    %v1652 = vsub.s32 4, %v1651
    %v1653 = vrot.slane %v1630, %v1652
    %v1654 = vlaneseq
    %v1655 = vshrl.u32 %v1654, 7
    %v1656 = vsub.s32 5, %v1655
    %v1657 = vrot.slane %v1630, %v1656
    %v1658 = vlaneseq
    %v1659 = vshrl.u32 %v1658, 7
    %v1660 = vsub.s32 6, %v1659
    %v1661 = vrot.slane %v1630, %v1660
    %v1662 = vlaneseq
    %v1663 = vshrl.u32 %v1662, 7
    %v1664 = vsub.s32 7, %v1663
    %v1665 = vrot.slane %v1630, %v1664
    %v1666 = vlaneseq
    %v1667 = vshrl.u32 %v1666, 7
    %v1668 = vsub.s32 0, %v1667
    %v1669 = vrot.slane %v1632, %v1668
    %v1670 = vlaneseq
    %v1671 = vshrl.u32 %v1670, 7
    %v1672 = vsub.s32 1, %v1671
    %v1673 = vrot.slane %v1632, %v1672
    %v1674 = vlaneseq
    %v1675 = vshrl.u32 %v1674, 7
    %v1676 = vsub.s32 2, %v1675
    %v1677 = vrot.slane %v1632, %v1676
    %v1678 = vlaneseq
    %v1679 = vshrl.u32 %v1678, 7
    %v1680 = vsub.s32 3, %v1679
    %v1681 = vrot.slane %v1632, %v1680
    %v1682 = vlaneseq
    %v1683 = vshrl.u32 %v1682, 7
    %v1684 = vsub.s32 4, %v1683
    %v1685 = vrot.slane %v1632, %v1684
    %v1686 = vlaneseq
    %v1687 = vshrl.u32 %v1686, 7
    %v1688 = vsub.s32 5, %v1687
    %v1689 = vrot.slane %v1632, %v1688
    %v1690 = vlaneseq
    %v1691 = vshrl.u32 %v1690, 7
    %v1692 = vsub.s32 6, %v1691
    %v1693 = vrot.slane %v1632, %v1692
    %v1694 = vlaneseq
    %v1695 = vshrl.u32 %v1694, 7
    %v1696 = vsub.s32 7, %v1695
    %v1697 = vrot.slane %v1632, %v1696
    %v1698 = vlaneseq
    %v1699 = vshrl.u32 %v1698, 7
    %v1700 = vsub.s32 0, %v1699
    %v1701 = vrot.slane %v1631, %v1700
    %v1702 = vlaneseq
    %v1703 = vshrl.u32 %v1702, 7
    %v1704 = vsub.s32 1, %v1703
    %v1705 = vrot.slane %v1631, %v1704
    %v1706 = vlaneseq
    %v1707 = vshrl.u32 %v1706, 7
    %v1708 = vsub.s32 2, %v1707
    %v1709 = vrot.slane %v1631, %v1708
    %v1710 = vlaneseq
    %v1711 = vshrl.u32 %v1710, 7
    %v1712 = vsub.s32 3, %v1711
    %v1713 = vrot.slane %v1631, %v1712
    %v1714 = vlaneseq
    %v1715 = vshrl.u32 %v1714, 7
    %v1716 = vsub.s32 4, %v1715
    %v1717 = vrot.slane %v1631, %v1716
    %v1718 = vlaneseq
    %v1719 = vshrl.u32 %v1718, 7
    %v1720 = vsub.s32 5, %v1719
    %v1721 = vrot.slane %v1631, %v1720
    %v1722 = vlaneseq
    %v1723 = vshrl.u32 %v1722, 7
    %v1724 = vsub.s32 6, %v1723
    %v1725 = vrot.slane %v1631, %v1724
    %v1726 = vlaneseq
    %v1727 = vshrl.u32 %v1726, 7
    %v1728 = vsub.s32 7, %v1727
    %v1729 = vrot.slane %v1631, %v1728
    %v1730 = vlaneseq
    %v1731 = vshrl.u32 %v1730, 7
    %v1732 = vsub.s32 0, %v1731
    %v1733 = vrot.slane %v1633, %v1732
    %v1734 = vlaneseq
    %v1735 = vshrl.u32 %v1734, 7
    %v1736 = vsub.s32 1, %v1735
    %v1737 = vrot.slane %v1633, %v1736
    %v1738 = vlaneseq
    %v1739 = vshrl.u32 %v1738, 7
    %v1740 = vsub.s32 2, %v1739
    %v1741 = vrot.slane %v1633, %v1740
    %v1742 = vlaneseq
    %v1743 = vshrl.u32 %v1742, 7
    %v1744 = vsub.s32 3, %v1743
    %v1745 = vrot.slane %v1633, %v1744
    %v1746 = vlaneseq
    %v1747 = vshrl.u32 %v1746, 7
    %v1748 = vsub.s32 4, %v1747
    %v1749 = vrot.slane %v1633, %v1748
    %v1750 = vlaneseq
    %v1751 = vshrl.u32 %v1750, 7
    %v1752 = vsub.s32 5, %v1751
    %v1753 = vrot.slane %v1633, %v1752
    %v1754 = vlaneseq
    %v1755 = vshrl.u32 %v1754, 7
    %v1756 = vsub.s32 6, %v1755
    %v1757 = vrot.slane %v1633, %v1756
    %v1758 = vlaneseq
    %v1759 = vshrl.u32 %v1758, 7
    %v1760 = vsub.s32 7, %v1759
    %v1761 = vrot.slane %v1633, %v1760
    %vm1762 = vcmp.eq.s32.totalorder %v1564, %v1637
    %vm1763 = vcmp.eq.s32.totalorder %v1564, %v1641
    %vm1764 = vcmp.eq.s32.totalorder %v1564, %v1645
    %vm1765 = vcmp.eq.s32.totalorder %v1564, %v1649
    %vm1766 = vcmp.eq.s32.totalorder %v1564, %v1653
    %vm1767 = vcmp.eq.s32.totalorder %v1564, %v1657
    %vm1768 = vcmp.eq.s32.totalorder %v1564, %v1661
    %vm1769 = vcmp.eq.s32.totalorder %v1564, %v1665
    %vm1770 = vcmp.eq.s32.totalorder %v1565, %v1637
    %vm1771 = vcmp.eq.s32.totalorder %v1565, %v1641
    %vm1772 = vcmp.eq.s32.totalorder %v1565, %v1645
    %vm1773 = vcmp.eq.s32.totalorder %v1565, %v1649
    %vm1774 = vcmp.eq.s32.totalorder %v1565, %v1653
    %vm1775 = vcmp.eq.s32.totalorder %v1565, %v1657
    %vm1776 = vcmp.eq.s32.totalorder %v1565, %v1661
    %vm1777 = vcmp.eq.s32.totalorder %v1565, %v1665
    %vm1778 = vcmp.eq.s32.totalorder %v1564, %v1669
    %vm1779 = vcmp.eq.s32.totalorder %v1564, %v1673
    %vm1780 = vcmp.eq.s32.totalorder %v1564, %v1677
    %vm1781 = vcmp.eq.s32.totalorder %v1564, %v1681
    %vm1782 = vcmp.eq.s32.totalorder %v1564, %v1685
    %vm1783 = vcmp.eq.s32.totalorder %v1564, %v1689
    %vm1784 = vcmp.eq.s32.totalorder %v1564, %v1693
    %vm1785 = vcmp.eq.s32.totalorder %v1564, %v1697
    %vm1786 = vcmp.eq.s32.totalorder %v1565, %v1669
    %vm1787 = vcmp.eq.s32.totalorder %v1565, %v1673
    %vm1788 = vcmp.eq.s32.totalorder %v1565, %v1677
    %vm1789 = vcmp.eq.s32.totalorder %v1565, %v1681
    %vm1790 = vcmp.eq.s32.totalorder %v1565, %v1685
    %vm1791 = vcmp.eq.s32.totalorder %v1565, %v1689
    %vm1792 = vcmp.eq.s32.totalorder %v1565, %v1693
    %vm1793 = vcmp.eq.s32.totalorder %v1565, %v1697
    %vm1794 = vcmp.eq.s32.totalorder %v1564, %v1701
    %vm1795 = vcmp.eq.s32.totalorder %v1564, %v1705
    %vm1796 = vcmp.eq.s32.totalorder %v1564, %v1709
    %vm1797 = vcmp.eq.s32.totalorder %v1564, %v1713
    %vm1798 = vcmp.eq.s32.totalorder %v1564, %v1717
    %vm1799 = vcmp.eq.s32.totalorder %v1564, %v1721
    %vm1800 = vcmp.eq.s32.totalorder %v1564, %v1725
    %vm1801 = vcmp.eq.s32.totalorder %v1564, %v1729
    %vm1802 = vcmp.eq.s32.totalorder %v1565, %v1701
    %vm1803 = vcmp.eq.s32.totalorder %v1565, %v1705
    %vm1804 = vcmp.eq.s32.totalorder %v1565, %v1709
    %vm1805 = vcmp.eq.s32.totalorder %v1565, %v1713
    %vm1806 = vcmp.eq.s32.totalorder %v1565, %v1717
    %vm1807 = vcmp.eq.s32.totalorder %v1565, %v1721
    %vm1808 = vcmp.eq.s32.totalorder %v1565, %v1725
    %vm1809 = vcmp.eq.s32.totalorder %v1565, %v1729
    %vm1810 = vcmp.eq.s32.totalorder %v1564, %v1733
    %vm1811 = vcmp.eq.s32.totalorder %v1564, %v1737
    %vm1812 = vcmp.eq.s32.totalorder %v1564, %v1741
    %vm1813 = vcmp.eq.s32.totalorder %v1564, %v1745
    %vm1814 = vcmp.eq.s32.totalorder %v1564, %v1749
    %vm1815 = vcmp.eq.s32.totalorder %v1564, %v1753
    %vm1816 = vcmp.eq.s32.totalorder %v1564, %v1757
    %vm1817 = vcmp.eq.s32.totalorder %v1564, %v1761
    %vm1818 = vcmp.eq.s32.totalorder %v1565, %v1733
    %vm1819 = vcmp.eq.s32.totalorder %v1565, %v1737
    %vm1820 = vcmp.eq.s32.totalorder %v1565, %v1741
    %vm1821 = vcmp.eq.s32.totalorder %v1565, %v1745
    %vm1822 = vcmp.eq.s32.totalorder %v1565, %v1749
    %vm1823 = vcmp.eq.s32.totalorder %v1565, %v1753
    %vm1824 = vcmp.eq.s32.totalorder %v1565, %v1757
    %vm1825 = vcmp.eq.s32.totalorder %v1565, %v1761
    %v1826 = vsel %vm1762, %v763, 0.0
    %v1827 = vsel %vm1763, %v764, 0.0
    %v1828 = vsel %vm1764, %v765, 0.0
    %v1829 = vsel %vm1765, %v766, 0.0
    %v1830 = vsel %vm1766, %v767, 0.0
    %v1831 = vsel %vm1767, %v768, 0.0
    %v1832 = vsel %vm1768, %v769, 0.0
    %v1833 = vsel %vm1769, %v770, 0.0
    %v1834 = vsel %vm1770, %v771, 0.0
    %v1835 = vsel %vm1771, %v772, 0.0
    %v1836 = vsel %vm1772, %v773, 0.0
    %v1837 = vsel %vm1773, %v774, 0.0
    %v1838 = vsel %vm1774, %v775, 0.0
    %v1839 = vsel %vm1775, %v776, 0.0
    %v1840 = vsel %vm1776, %v777, 0.0
    %v1841 = vsel %vm1777, %v778, 0.0
    %v1842 = vsel %vm1778, %v779, 0.0
    %v1843 = vsel %vm1779, %v780, 0.0
    %v1844 = vsel %vm1780, %v781, 0.0
    %v1845 = vsel %vm1781, %v782, 0.0
    %v1846 = vsel %vm1782, %v783, 0.0
    %v1847 = vsel %vm1783, %v784, 0.0
    %v1848 = vsel %vm1784, %v785, 0.0
    %v1849 = vsel %vm1785, %v786, 0.0
    %v1850 = vsel %vm1786, %v787, 0.0
    %v1851 = vsel %vm1787, %v788, 0.0
    %v1852 = vsel %vm1788, %v789, 0.0
    %v1853 = vsel %vm1789, %v790, 0.0
    %v1854 = vsel %vm1790, %v791, 0.0
    %v1855 = vsel %vm1791, %v792, 0.0
    %v1856 = vsel %vm1792, %v793, 0.0
    %v1857 = vsel %vm1793, %v794, 0.0
    %v1858 = vsel %vm1794, %v795, 0.0
    %v1859 = vsel %vm1795, %v796, 0.0
    %v1860 = vsel %vm1796, %v797, 0.0
    %v1861 = vsel %vm1797, %v798, 0.0
    %v1862 = vsel %vm1798, %v799, 0.0
    %v1863 = vsel %vm1799, %v800, 0.0
    %v1864 = vsel %vm1800, %v801, 0.0
    %v1865 = vsel %vm1801, %v802, 0.0
    %v1866 = vsel %vm1802, %v803, 0.0
    %v1867 = vsel %vm1803, %v804, 0.0
    %v1868 = vsel %vm1804, %v805, 0.0
    %v1869 = vsel %vm1805, %v806, 0.0
    %v1870 = vsel %vm1806, %v807, 0.0
    %v1871 = vsel %vm1807, %v808, 0.0
    %v1872 = vsel %vm1808, %v809, 0.0
    %v1873 = vsel %vm1809, %v810, 0.0
    %v1874 = vsel %vm1810, %v811, 0.0
    %v1875 = vsel %vm1811, %v812, 0.0
    %v1876 = vsel %vm1812, %v813, 0.0
    %v1877 = vsel %vm1813, %v814, 0.0
    %v1878 = vsel %vm1814, %v815, 0.0
    %v1879 = vsel %vm1815, %v816, 0.0
    %v1880 = vsel %vm1816, %v817, 0.0
    %v1881 = vsel %vm1817, %v818, 0.0
    %v1882 = vsel %vm1818, %v819, 0.0
    %v1883 = vsel %vm1819, %v820, 0.0
    %v1884 = vsel %vm1820, %v821, 0.0
    %v1885 = vsel %vm1821, %v822, 0.0
    %v1886 = vsel %vm1822, %v823, 0.0
    %v1887 = vsel %vm1823, %v824, 0.0
    %v1888 = vsel %vm1824, %v825, 0.0
    %v1889 = vsel %vm1825, %v826, 0.0
    %v1890 = vadd.f32 %v1826, %v1834
    %v1891 = vrot.slane %v1890, 4
    %v1892 = vadd.f32 %v1890, %v1891
    %v1893 = vrot.slane %v1892, 2
    %v1894 = vadd.f32 %v1892, %v1893
    %v1895 = vrot.slane %v1894, 1
    %v1896 = vadd.f32 %v1894, %v1895
    %v1897 = vadd.f32 %v1827, %v1835
    %v1898 = vrot.slane %v1897, 4
    %v1899 = vadd.f32 %v1897, %v1898
    %v1900 = vrot.slane %v1899, 2
    %v1901 = vadd.f32 %v1899, %v1900
    %v1902 = vrot.slane %v1901, 1
    %v1903 = vadd.f32 %v1901, %v1902
    %v1904 = vadd.f32 %v1828, %v1836
    %v1905 = vrot.slane %v1904, 4
    %v1906 = vadd.f32 %v1904, %v1905
    %v1907 = vrot.slane %v1906, 2
    %v1908 = vadd.f32 %v1906, %v1907
    %v1909 = vrot.slane %v1908, 1
    %v1910 = vadd.f32 %v1908, %v1909
    %v1911 = vadd.f32 %v1829, %v1837
    %v1912 = vrot.slane %v1911, 4
    %v1913 = vadd.f32 %v1911, %v1912
    %v1914 = vrot.slane %v1913, 2
    %v1915 = vadd.f32 %v1913, %v1914
    %v1916 = vrot.slane %v1915, 1
    %v1917 = vadd.f32 %v1915, %v1916
    %v1918 = vadd.f32 %v1830, %v1838
    %v1919 = vrot.slane %v1918, 4
    %v1920 = vadd.f32 %v1918, %v1919
    %v1921 = vrot.slane %v1920, 2
    %v1922 = vadd.f32 %v1920, %v1921
    %v1923 = vrot.slane %v1922, 1
    %v1924 = vadd.f32 %v1922, %v1923
    %v1925 = vadd.f32 %v1831, %v1839
    %v1926 = vrot.slane %v1925, 4
    %v1927 = vadd.f32 %v1925, %v1926
    %v1928 = vrot.slane %v1927, 2
    %v1929 = vadd.f32 %v1927, %v1928
    %v1930 = vrot.slane %v1929, 1
    %v1931 = vadd.f32 %v1929, %v1930
    %v1932 = vadd.f32 %v1832, %v1840
    %v1933 = vrot.slane %v1932, 4
    %v1934 = vadd.f32 %v1932, %v1933
    %v1935 = vrot.slane %v1934, 2
    %v1936 = vadd.f32 %v1934, %v1935
    %v1937 = vrot.slane %v1936, 1
    %v1938 = vadd.f32 %v1936, %v1937
    %v1939 = vadd.f32 %v1833, %v1841
    %v1940 = vrot.slane %v1939, 4
    %v1941 = vadd.f32 %v1939, %v1940
    %v1942 = vrot.slane %v1941, 2
    %v1943 = vadd.f32 %v1941, %v1942
    %v1944 = vrot.slane %v1943, 1
    %v1945 = vadd.f32 %v1943, %v1944
    %v1946 = vadd.f32 %v1842, %v1850
    %v1947 = vrot.slane %v1946, 4
    %v1948 = vadd.f32 %v1946, %v1947
    %v1949 = vrot.slane %v1948, 2
    %v1950 = vadd.f32 %v1948, %v1949
    %v1951 = vrot.slane %v1950, 1
    %v1952 = vadd.f32 %v1950, %v1951
    %v1953 = vadd.f32 %v1843, %v1851
    %v1954 = vrot.slane %v1953, 4
    %v1955 = vadd.f32 %v1953, %v1954
    %v1956 = vrot.slane %v1955, 2
    %v1957 = vadd.f32 %v1955, %v1956
    %v1958 = vrot.slane %v1957, 1
    %v1959 = vadd.f32 %v1957, %v1958
    %v1960 = vadd.f32 %v1844, %v1852
    %v1961 = vrot.slane %v1960, 4
    %v1962 = vadd.f32 %v1960, %v1961
    %v1963 = vrot.slane %v1962, 2
    %v1964 = vadd.f32 %v1962, %v1963
    %v1965 = vrot.slane %v1964, 1
    %v1966 = vadd.f32 %v1964, %v1965
    %v1967 = vadd.f32 %v1845, %v1853
    %v1968 = vrot.slane %v1967, 4
    %v1969 = vadd.f32 %v1967, %v1968
    %v1970 = vrot.slane %v1969, 2
    %v1971 = vadd.f32 %v1969, %v1970
    %v1972 = vrot.slane %v1971, 1
    %v1973 = vadd.f32 %v1971, %v1972
    %v1974 = vadd.f32 %v1846, %v1854
    %v1975 = vrot.slane %v1974, 4
    %v1976 = vadd.f32 %v1974, %v1975
    %v1977 = vrot.slane %v1976, 2
    %v1978 = vadd.f32 %v1976, %v1977
    %v1979 = vrot.slane %v1978, 1
    %v1980 = vadd.f32 %v1978, %v1979
    %v1981 = vadd.f32 %v1847, %v1855
    %v1982 = vrot.slane %v1981, 4
    %v1983 = vadd.f32 %v1981, %v1982
    %v1984 = vrot.slane %v1983, 2
    %v1985 = vadd.f32 %v1983, %v1984
    %v1986 = vrot.slane %v1985, 1
    %v1987 = vadd.f32 %v1985, %v1986
    %v1988 = vadd.f32 %v1848, %v1856
    %v1989 = vrot.slane %v1988, 4
    %v1990 = vadd.f32 %v1988, %v1989
    %v1991 = vrot.slane %v1990, 2
    %v1992 = vadd.f32 %v1990, %v1991
    %v1993 = vrot.slane %v1992, 1
    %v1994 = vadd.f32 %v1992, %v1993
    %v1995 = vadd.f32 %v1849, %v1857
    %v1996 = vrot.slane %v1995, 4
    %v1997 = vadd.f32 %v1995, %v1996
    %v1998 = vrot.slane %v1997, 2
    %v1999 = vadd.f32 %v1997, %v1998
    %v2000 = vrot.slane %v1999, 1
    %v2001 = vadd.f32 %v1999, %v2000
    %v2002 = vadd.f32 %v1858, %v1866
    %v2003 = vrot.slane %v2002, 4
    %v2004 = vadd.f32 %v2002, %v2003
    %v2005 = vrot.slane %v2004, 2
    %v2006 = vadd.f32 %v2004, %v2005
    %v2007 = vrot.slane %v2006, 1
    %v2008 = vadd.f32 %v2006, %v2007
    %v2009 = vadd.f32 %v1859, %v1867
    %v2010 = vrot.slane %v2009, 4
    %v2011 = vadd.f32 %v2009, %v2010
    %v2012 = vrot.slane %v2011, 2
    %v2013 = vadd.f32 %v2011, %v2012
    %v2014 = vrot.slane %v2013, 1
    %v2015 = vadd.f32 %v2013, %v2014
    %v2016 = vadd.f32 %v1860, %v1868
    %v2017 = vrot.slane %v2016, 4
    %v2018 = vadd.f32 %v2016, %v2017
    %v2019 = vrot.slane %v2018, 2
    %v2020 = vadd.f32 %v2018, %v2019
    %v2021 = vrot.slane %v2020, 1
    %v2022 = vadd.f32 %v2020, %v2021
    %v2023 = vadd.f32 %v1861, %v1869
    %v2024 = vrot.slane %v2023, 4
    %v2025 = vadd.f32 %v2023, %v2024
    %v2026 = vrot.slane %v2025, 2
    %v2027 = vadd.f32 %v2025, %v2026
    %v2028 = vrot.slane %v2027, 1
    %v2029 = vadd.f32 %v2027, %v2028
    %v2030 = vadd.f32 %v1862, %v1870
    %v2031 = vrot.slane %v2030, 4
    %v2032 = vadd.f32 %v2030, %v2031
    %v2033 = vrot.slane %v2032, 2
    %v2034 = vadd.f32 %v2032, %v2033
    %v2035 = vrot.slane %v2034, 1
    %v2036 = vadd.f32 %v2034, %v2035
    %v2037 = vadd.f32 %v1863, %v1871
    %v2038 = vrot.slane %v2037, 4
    %v2039 = vadd.f32 %v2037, %v2038
    %v2040 = vrot.slane %v2039, 2
    %v2041 = vadd.f32 %v2039, %v2040
    %v2042 = vrot.slane %v2041, 1
    %v2043 = vadd.f32 %v2041, %v2042
    %v2044 = vadd.f32 %v1864, %v1872
    %v2045 = vrot.slane %v2044, 4
    %v2046 = vadd.f32 %v2044, %v2045
    %v2047 = vrot.slane %v2046, 2
    %v2048 = vadd.f32 %v2046, %v2047
    %v2049 = vrot.slane %v2048, 1
    %v2050 = vadd.f32 %v2048, %v2049
    %v2051 = vadd.f32 %v1865, %v1873
    %v2052 = vrot.slane %v2051, 4
    %v2053 = vadd.f32 %v2051, %v2052
    %v2054 = vrot.slane %v2053, 2
    %v2055 = vadd.f32 %v2053, %v2054
    %v2056 = vrot.slane %v2055, 1
    %v2057 = vadd.f32 %v2055, %v2056
    %v2058 = vadd.f32 %v1874, %v1882
    %v2059 = vrot.slane %v2058, 4
    %v2060 = vadd.f32 %v2058, %v2059
    %v2061 = vrot.slane %v2060, 2
    %v2062 = vadd.f32 %v2060, %v2061
    %v2063 = vrot.slane %v2062, 1
    %v2064 = vadd.f32 %v2062, %v2063
    %v2065 = vadd.f32 %v1875, %v1883
    %v2066 = vrot.slane %v2065, 4
    %v2067 = vadd.f32 %v2065, %v2066
    %v2068 = vrot.slane %v2067, 2
    %v2069 = vadd.f32 %v2067, %v2068
    %v2070 = vrot.slane %v2069, 1
    %v2071 = vadd.f32 %v2069, %v2070
    %v2072 = vadd.f32 %v1876, %v1884
    %v2073 = vrot.slane %v2072, 4
    %v2074 = vadd.f32 %v2072, %v2073
    %v2075 = vrot.slane %v2074, 2
    %v2076 = vadd.f32 %v2074, %v2075
    %v2077 = vrot.slane %v2076, 1
    %v2078 = vadd.f32 %v2076, %v2077
    %v2079 = vadd.f32 %v1877, %v1885
    %v2080 = vrot.slane %v2079, 4
    %v2081 = vadd.f32 %v2079, %v2080
    %v2082 = vrot.slane %v2081, 2
    %v2083 = vadd.f32 %v2081, %v2082
    %v2084 = vrot.slane %v2083, 1
    %v2085 = vadd.f32 %v2083, %v2084
    %v2086 = vadd.f32 %v1878, %v1886
    %v2087 = vrot.slane %v2086, 4
    %v2088 = vadd.f32 %v2086, %v2087
    %v2089 = vrot.slane %v2088, 2
    %v2090 = vadd.f32 %v2088, %v2089
    %v2091 = vrot.slane %v2090, 1
    %v2092 = vadd.f32 %v2090, %v2091
    %v2093 = vadd.f32 %v1879, %v1887
    %v2094 = vrot.slane %v2093, 4
    %v2095 = vadd.f32 %v2093, %v2094
    %v2096 = vrot.slane %v2095, 2
    %v2097 = vadd.f32 %v2095, %v2096
    %v2098 = vrot.slane %v2097, 1
    %v2099 = vadd.f32 %v2097, %v2098
    %v2100 = vadd.f32 %v1880, %v1888
    %v2101 = vrot.slane %v2100, 4
    %v2102 = vadd.f32 %v2100, %v2101
    %v2103 = vrot.slane %v2102, 2
    %v2104 = vadd.f32 %v2102, %v2103
    %v2105 = vrot.slane %v2104, 1
    %v2106 = vadd.f32 %v2104, %v2105
    %v2107 = vadd.f32 %v1881, %v1889
    %v2108 = vrot.slane %v2107, 4
    %v2109 = vadd.f32 %v2107, %v2108
    %v2110 = vrot.slane %v2109, 2
    %v2111 = vadd.f32 %v2109, %v2110
    %v2112 = vrot.slane %v2111, 1
    %v2113 = vadd.f32 %v2111, %v2112
    %v2114 = vadd.s32 %v1630, 1
    %v2115 = vadd.s32 %v1632, 1
    %v2116 = vadd.s32 %v1631, 1
    %v2117 = vadd.s32 %v1633, 1
    %v2118 = vlaneseq
    %v2119 = vshrl.u32 %v2118, 7
    %v2120 = vsub.s32 0, %v2119
    %v2121 = vrot.slane %v2114, %v2120
    %v2122 = vlaneseq
    %v2123 = vshrl.u32 %v2122, 7
    %v2124 = vsub.s32 1, %v2123
    %v2125 = vrot.slane %v2114, %v2124
    %v2126 = vlaneseq
    %v2127 = vshrl.u32 %v2126, 7
    %v2128 = vsub.s32 2, %v2127
    %v2129 = vrot.slane %v2114, %v2128
    %v2130 = vlaneseq
    %v2131 = vshrl.u32 %v2130, 7
    %v2132 = vsub.s32 3, %v2131
    %v2133 = vrot.slane %v2114, %v2132
    %v2134 = vlaneseq
    %v2135 = vshrl.u32 %v2134, 7
    %v2136 = vsub.s32 4, %v2135
    %v2137 = vrot.slane %v2114, %v2136
    %v2138 = vlaneseq
    %v2139 = vshrl.u32 %v2138, 7
    %v2140 = vsub.s32 5, %v2139
    %v2141 = vrot.slane %v2114, %v2140
    %v2142 = vlaneseq
    %v2143 = vshrl.u32 %v2142, 7
    %v2144 = vsub.s32 6, %v2143
    %v2145 = vrot.slane %v2114, %v2144
    %v2146 = vlaneseq
    %v2147 = vshrl.u32 %v2146, 7
    %v2148 = vsub.s32 7, %v2147
    %v2149 = vrot.slane %v2114, %v2148
    %v2150 = vlaneseq
    %v2151 = vshrl.u32 %v2150, 7
    %v2152 = vsub.s32 0, %v2151
    %v2153 = vrot.slane %v2115, %v2152
    %v2154 = vlaneseq
    %v2155 = vshrl.u32 %v2154, 7
    %v2156 = vsub.s32 1, %v2155
    %v2157 = vrot.slane %v2115, %v2156
    %v2158 = vlaneseq
    %v2159 = vshrl.u32 %v2158, 7
    %v2160 = vsub.s32 2, %v2159
    %v2161 = vrot.slane %v2115, %v2160
    %v2162 = vlaneseq
    %v2163 = vshrl.u32 %v2162, 7
    %v2164 = vsub.s32 3, %v2163
    %v2165 = vrot.slane %v2115, %v2164
    %v2166 = vlaneseq
    %v2167 = vshrl.u32 %v2166, 7
    %v2168 = vsub.s32 4, %v2167
    %v2169 = vrot.slane %v2115, %v2168
    %v2170 = vlaneseq
    %v2171 = vshrl.u32 %v2170, 7
    %v2172 = vsub.s32 5, %v2171
    %v2173 = vrot.slane %v2115, %v2172
    %v2174 = vlaneseq
    %v2175 = vshrl.u32 %v2174, 7
    %v2176 = vsub.s32 6, %v2175
    %v2177 = vrot.slane %v2115, %v2176
    %v2178 = vlaneseq
    %v2179 = vshrl.u32 %v2178, 7
    %v2180 = vsub.s32 7, %v2179
    %v2181 = vrot.slane %v2115, %v2180
    %v2182 = vlaneseq
    %v2183 = vshrl.u32 %v2182, 7
    %v2184 = vsub.s32 0, %v2183
    %v2185 = vrot.slane %v2116, %v2184
    %v2186 = vlaneseq
    %v2187 = vshrl.u32 %v2186, 7
    %v2188 = vsub.s32 1, %v2187
    %v2189 = vrot.slane %v2116, %v2188
    %v2190 = vlaneseq
    %v2191 = vshrl.u32 %v2190, 7
    %v2192 = vsub.s32 2, %v2191
    %v2193 = vrot.slane %v2116, %v2192
    %v2194 = vlaneseq
    %v2195 = vshrl.u32 %v2194, 7
    %v2196 = vsub.s32 3, %v2195
    %v2197 = vrot.slane %v2116, %v2196
    %v2198 = vlaneseq
    %v2199 = vshrl.u32 %v2198, 7
    %v2200 = vsub.s32 4, %v2199
    %v2201 = vrot.slane %v2116, %v2200
    %v2202 = vlaneseq
    %v2203 = vshrl.u32 %v2202, 7
    %v2204 = vsub.s32 5, %v2203
    %v2205 = vrot.slane %v2116, %v2204
    %v2206 = vlaneseq
    %v2207 = vshrl.u32 %v2206, 7
    %v2208 = vsub.s32 6, %v2207
    %v2209 = vrot.slane %v2116, %v2208
    %v2210 = vlaneseq
    %v2211 = vshrl.u32 %v2210, 7
    %v2212 = vsub.s32 7, %v2211
    %v2213 = vrot.slane %v2116, %v2212
    %v2214 = vlaneseq
    %v2215 = vshrl.u32 %v2214, 7
    %v2216 = vsub.s32 0, %v2215
    %v2217 = vrot.slane %v2117, %v2216
    %v2218 = vlaneseq
    %v2219 = vshrl.u32 %v2218, 7
    %v2220 = vsub.s32 1, %v2219
    %v2221 = vrot.slane %v2117, %v2220
    %v2222 = vlaneseq
    %v2223 = vshrl.u32 %v2222, 7
    %v2224 = vsub.s32 2, %v2223
    %v2225 = vrot.slane %v2117, %v2224
    %v2226 = vlaneseq
    %v2227 = vshrl.u32 %v2226, 7
    %v2228 = vsub.s32 3, %v2227
    %v2229 = vrot.slane %v2117, %v2228
    %v2230 = vlaneseq
    %v2231 = vshrl.u32 %v2230, 7
    %v2232 = vsub.s32 4, %v2231
    %v2233 = vrot.slane %v2117, %v2232
    %v2234 = vlaneseq
    %v2235 = vshrl.u32 %v2234, 7
    %v2236 = vsub.s32 5, %v2235
    %v2237 = vrot.slane %v2117, %v2236
    %v2238 = vlaneseq
    %v2239 = vshrl.u32 %v2238, 7
    %v2240 = vsub.s32 6, %v2239
    %v2241 = vrot.slane %v2117, %v2240
    %v2242 = vlaneseq
    %v2243 = vshrl.u32 %v2242, 7
    %v2244 = vsub.s32 7, %v2243
    %v2245 = vrot.slane %v2117, %v2244
    %vm2246 = vcmp.eq.s32.totalorder %v1564, %v2121
    %vm2247 = vcmp.eq.s32.totalorder %v1564, %v2125
    %vm2248 = vcmp.eq.s32.totalorder %v1564, %v2129
    %vm2249 = vcmp.eq.s32.totalorder %v1564, %v2133
    %vm2250 = vcmp.eq.s32.totalorder %v1564, %v2137
    %vm2251 = vcmp.eq.s32.totalorder %v1564, %v2141
    %vm2252 = vcmp.eq.s32.totalorder %v1564, %v2145
    %vm2253 = vcmp.eq.s32.totalorder %v1564, %v2149
    %vm2254 = vcmp.eq.s32.totalorder %v1565, %v2121
    %vm2255 = vcmp.eq.s32.totalorder %v1565, %v2125
    %vm2256 = vcmp.eq.s32.totalorder %v1565, %v2129
    %vm2257 = vcmp.eq.s32.totalorder %v1565, %v2133
    %vm2258 = vcmp.eq.s32.totalorder %v1565, %v2137
    %vm2259 = vcmp.eq.s32.totalorder %v1565, %v2141
    %vm2260 = vcmp.eq.s32.totalorder %v1565, %v2145
    %vm2261 = vcmp.eq.s32.totalorder %v1565, %v2149
    %vm2262 = vcmp.eq.s32.totalorder %v1564, %v2153
    %vm2263 = vcmp.eq.s32.totalorder %v1564, %v2157
    %vm2264 = vcmp.eq.s32.totalorder %v1564, %v2161
    %vm2265 = vcmp.eq.s32.totalorder %v1564, %v2165
    %vm2266 = vcmp.eq.s32.totalorder %v1564, %v2169
    %vm2267 = vcmp.eq.s32.totalorder %v1564, %v2173
    %vm2268 = vcmp.eq.s32.totalorder %v1564, %v2177
    %vm2269 = vcmp.eq.s32.totalorder %v1564, %v2181
    %vm2270 = vcmp.eq.s32.totalorder %v1565, %v2153
    %vm2271 = vcmp.eq.s32.totalorder %v1565, %v2157
    %vm2272 = vcmp.eq.s32.totalorder %v1565, %v2161
    %vm2273 = vcmp.eq.s32.totalorder %v1565, %v2165
    %vm2274 = vcmp.eq.s32.totalorder %v1565, %v2169
    %vm2275 = vcmp.eq.s32.totalorder %v1565, %v2173
    %vm2276 = vcmp.eq.s32.totalorder %v1565, %v2177
    %vm2277 = vcmp.eq.s32.totalorder %v1565, %v2181
    %vm2278 = vcmp.eq.s32.totalorder %v1564, %v2185
    %vm2279 = vcmp.eq.s32.totalorder %v1564, %v2189
    %vm2280 = vcmp.eq.s32.totalorder %v1564, %v2193
    %vm2281 = vcmp.eq.s32.totalorder %v1564, %v2197
    %vm2282 = vcmp.eq.s32.totalorder %v1564, %v2201
    %vm2283 = vcmp.eq.s32.totalorder %v1564, %v2205
    %vm2284 = vcmp.eq.s32.totalorder %v1564, %v2209
    %vm2285 = vcmp.eq.s32.totalorder %v1564, %v2213
    %vm2286 = vcmp.eq.s32.totalorder %v1565, %v2185
    %vm2287 = vcmp.eq.s32.totalorder %v1565, %v2189
    %vm2288 = vcmp.eq.s32.totalorder %v1565, %v2193
    %vm2289 = vcmp.eq.s32.totalorder %v1565, %v2197
    %vm2290 = vcmp.eq.s32.totalorder %v1565, %v2201
    %vm2291 = vcmp.eq.s32.totalorder %v1565, %v2205
    %vm2292 = vcmp.eq.s32.totalorder %v1565, %v2209
    %vm2293 = vcmp.eq.s32.totalorder %v1565, %v2213
    %vm2294 = vcmp.eq.s32.totalorder %v1564, %v2217
    %vm2295 = vcmp.eq.s32.totalorder %v1564, %v2221
    %vm2296 = vcmp.eq.s32.totalorder %v1564, %v2225
    %vm2297 = vcmp.eq.s32.totalorder %v1564, %v2229
    %vm2298 = vcmp.eq.s32.totalorder %v1564, %v2233
    %vm2299 = vcmp.eq.s32.totalorder %v1564, %v2237
    %vm2300 = vcmp.eq.s32.totalorder %v1564, %v2241
    %vm2301 = vcmp.eq.s32.totalorder %v1564, %v2245
    %vm2302 = vcmp.eq.s32.totalorder %v1565, %v2217
    %vm2303 = vcmp.eq.s32.totalorder %v1565, %v2221
    %vm2304 = vcmp.eq.s32.totalorder %v1565, %v2225
    %vm2305 = vcmp.eq.s32.totalorder %v1565, %v2229
    %vm2306 = vcmp.eq.s32.totalorder %v1565, %v2233
    %vm2307 = vcmp.eq.s32.totalorder %v1565, %v2237
    %vm2308 = vcmp.eq.s32.totalorder %v1565, %v2241
    %vm2309 = vcmp.eq.s32.totalorder %v1565, %v2245
    %v2310 = vsel %vm2246, %v763, 0.0
    %v2311 = vsel %vm2247, %v764, 0.0
    %v2312 = vsel %vm2248, %v765, 0.0
    %v2313 = vsel %vm2249, %v766, 0.0
    %v2314 = vsel %vm2250, %v767, 0.0
    %v2315 = vsel %vm2251, %v768, 0.0
    %v2316 = vsel %vm2252, %v769, 0.0
    %v2317 = vsel %vm2253, %v770, 0.0
    %v2318 = vsel %vm2254, %v771, 0.0
    %v2319 = vsel %vm2255, %v772, 0.0
    %v2320 = vsel %vm2256, %v773, 0.0
    %v2321 = vsel %vm2257, %v774, 0.0
    %v2322 = vsel %vm2258, %v775, 0.0
    %v2323 = vsel %vm2259, %v776, 0.0
    %v2324 = vsel %vm2260, %v777, 0.0
    %v2325 = vsel %vm2261, %v778, 0.0
    %v2326 = vsel %vm2262, %v779, 0.0
    %v2327 = vsel %vm2263, %v780, 0.0
    %v2328 = vsel %vm2264, %v781, 0.0
    %v2329 = vsel %vm2265, %v782, 0.0
    %v2330 = vsel %vm2266, %v783, 0.0
    %v2331 = vsel %vm2267, %v784, 0.0
    %v2332 = vsel %vm2268, %v785, 0.0
    %v2333 = vsel %vm2269, %v786, 0.0
    %v2334 = vsel %vm2270, %v787, 0.0
    %v2335 = vsel %vm2271, %v788, 0.0
    %v2336 = vsel %vm2272, %v789, 0.0
    %v2337 = vsel %vm2273, %v790, 0.0
    %v2338 = vsel %vm2274, %v791, 0.0
    %v2339 = vsel %vm2275, %v792, 0.0
    %v2340 = vsel %vm2276, %v793, 0.0
    %v2341 = vsel %vm2277, %v794, 0.0
    %v2342 = vsel %vm2278, %v795, 0.0
    %v2343 = vsel %vm2279, %v796, 0.0
    %v2344 = vsel %vm2280, %v797, 0.0
    %v2345 = vsel %vm2281, %v798, 0.0
    %v2346 = vsel %vm2282, %v799, 0.0
    %v2347 = vsel %vm2283, %v800, 0.0
    %v2348 = vsel %vm2284, %v801, 0.0
    %v2349 = vsel %vm2285, %v802, 0.0
    %v2350 = vsel %vm2286, %v803, 0.0
    %v2351 = vsel %vm2287, %v804, 0.0
    %v2352 = vsel %vm2288, %v805, 0.0
    %v2353 = vsel %vm2289, %v806, 0.0
    %v2354 = vsel %vm2290, %v807, 0.0
    %v2355 = vsel %vm2291, %v808, 0.0
    %v2356 = vsel %vm2292, %v809, 0.0
    %v2357 = vsel %vm2293, %v810, 0.0
    %v2358 = vsel %vm2294, %v811, 0.0
    %v2359 = vsel %vm2295, %v812, 0.0
    %v2360 = vsel %vm2296, %v813, 0.0
    %v2361 = vsel %vm2297, %v814, 0.0
    %v2362 = vsel %vm2298, %v815, 0.0
    %v2363 = vsel %vm2299, %v816, 0.0
    %v2364 = vsel %vm2300, %v817, 0.0
    %v2365 = vsel %vm2301, %v818, 0.0
    %v2366 = vsel %vm2302, %v819, 0.0
    %v2367 = vsel %vm2303, %v820, 0.0
    %v2368 = vsel %vm2304, %v821, 0.0
    %v2369 = vsel %vm2305, %v822, 0.0
    %v2370 = vsel %vm2306, %v823, 0.0
    %v2371 = vsel %vm2307, %v824, 0.0
    %v2372 = vsel %vm2308, %v825, 0.0
    %v2373 = vsel %vm2309, %v826, 0.0
    %v2374 = vadd.f32 %v2310, %v2318
    %v2375 = vrot.slane %v2374, 4
    %v2376 = vadd.f32 %v2374, %v2375
    %v2377 = vrot.slane %v2376, 2
    %v2378 = vadd.f32 %v2376, %v2377
    %v2379 = vrot.slane %v2378, 1
    %v2380 = vadd.f32 %v2378, %v2379
    %v2381 = vadd.f32 %v2311, %v2319
    %v2382 = vrot.slane %v2381, 4
    %v2383 = vadd.f32 %v2381, %v2382
    %v2384 = vrot.slane %v2383, 2
    %v2385 = vadd.f32 %v2383, %v2384
    %v2386 = vrot.slane %v2385, 1
    %v2387 = vadd.f32 %v2385, %v2386
    %v2388 = vadd.f32 %v2312, %v2320
    %v2389 = vrot.slane %v2388, 4
    %v2390 = vadd.f32 %v2388, %v2389
    %v2391 = vrot.slane %v2390, 2
    %v2392 = vadd.f32 %v2390, %v2391
    %v2393 = vrot.slane %v2392, 1
    %v2394 = vadd.f32 %v2392, %v2393
    %v2395 = vadd.f32 %v2313, %v2321
    %v2396 = vrot.slane %v2395, 4
    %v2397 = vadd.f32 %v2395, %v2396
    %v2398 = vrot.slane %v2397, 2
    %v2399 = vadd.f32 %v2397, %v2398
    %v2400 = vrot.slane %v2399, 1
    %v2401 = vadd.f32 %v2399, %v2400
    %v2402 = vadd.f32 %v2314, %v2322
    %v2403 = vrot.slane %v2402, 4
    %v2404 = vadd.f32 %v2402, %v2403
    %v2405 = vrot.slane %v2404, 2
    %v2406 = vadd.f32 %v2404, %v2405
    %v2407 = vrot.slane %v2406, 1
    %v2408 = vadd.f32 %v2406, %v2407
    %v2409 = vadd.f32 %v2315, %v2323
    %v2410 = vrot.slane %v2409, 4
    %v2411 = vadd.f32 %v2409, %v2410
    %v2412 = vrot.slane %v2411, 2
    %v2413 = vadd.f32 %v2411, %v2412
    %v2414 = vrot.slane %v2413, 1
    %v2415 = vadd.f32 %v2413, %v2414
    %v2416 = vadd.f32 %v2316, %v2324
    %v2417 = vrot.slane %v2416, 4
    %v2418 = vadd.f32 %v2416, %v2417
    %v2419 = vrot.slane %v2418, 2
    %v2420 = vadd.f32 %v2418, %v2419
    %v2421 = vrot.slane %v2420, 1
    %v2422 = vadd.f32 %v2420, %v2421
    %v2423 = vadd.f32 %v2317, %v2325
    %v2424 = vrot.slane %v2423, 4
    %v2425 = vadd.f32 %v2423, %v2424
    %v2426 = vrot.slane %v2425, 2
    %v2427 = vadd.f32 %v2425, %v2426
    %v2428 = vrot.slane %v2427, 1
    %v2429 = vadd.f32 %v2427, %v2428
    %v2430 = vadd.f32 %v2326, %v2334
    %v2431 = vrot.slane %v2430, 4
    %v2432 = vadd.f32 %v2430, %v2431
    %v2433 = vrot.slane %v2432, 2
    %v2434 = vadd.f32 %v2432, %v2433
    %v2435 = vrot.slane %v2434, 1
    %v2436 = vadd.f32 %v2434, %v2435
    %v2437 = vadd.f32 %v2327, %v2335
    %v2438 = vrot.slane %v2437, 4
    %v2439 = vadd.f32 %v2437, %v2438
    %v2440 = vrot.slane %v2439, 2
    %v2441 = vadd.f32 %v2439, %v2440
    %v2442 = vrot.slane %v2441, 1
    %v2443 = vadd.f32 %v2441, %v2442
    %v2444 = vadd.f32 %v2328, %v2336
    %v2445 = vrot.slane %v2444, 4
    %v2446 = vadd.f32 %v2444, %v2445
    %v2447 = vrot.slane %v2446, 2
    %v2448 = vadd.f32 %v2446, %v2447
    %v2449 = vrot.slane %v2448, 1
    %v2450 = vadd.f32 %v2448, %v2449
    %v2451 = vadd.f32 %v2329, %v2337
    %v2452 = vrot.slane %v2451, 4
    %v2453 = vadd.f32 %v2451, %v2452
    %v2454 = vrot.slane %v2453, 2
    %v2455 = vadd.f32 %v2453, %v2454
    %v2456 = vrot.slane %v2455, 1
    %v2457 = vadd.f32 %v2455, %v2456
    %v2458 = vadd.f32 %v2330, %v2338
    %v2459 = vrot.slane %v2458, 4
    %v2460 = vadd.f32 %v2458, %v2459
    %v2461 = vrot.slane %v2460, 2
    %v2462 = vadd.f32 %v2460, %v2461
    %v2463 = vrot.slane %v2462, 1
    %v2464 = vadd.f32 %v2462, %v2463
    %v2465 = vadd.f32 %v2331, %v2339
    %v2466 = vrot.slane %v2465, 4
    %v2467 = vadd.f32 %v2465, %v2466
    %v2468 = vrot.slane %v2467, 2
    %v2469 = vadd.f32 %v2467, %v2468
    %v2470 = vrot.slane %v2469, 1
    %v2471 = vadd.f32 %v2469, %v2470
    %v2472 = vadd.f32 %v2332, %v2340
    %v2473 = vrot.slane %v2472, 4
    %v2474 = vadd.f32 %v2472, %v2473
    %v2475 = vrot.slane %v2474, 2
    %v2476 = vadd.f32 %v2474, %v2475
    %v2477 = vrot.slane %v2476, 1
    %v2478 = vadd.f32 %v2476, %v2477
    %v2479 = vadd.f32 %v2333, %v2341
    %v2480 = vrot.slane %v2479, 4
    %v2481 = vadd.f32 %v2479, %v2480
    %v2482 = vrot.slane %v2481, 2
    %v2483 = vadd.f32 %v2481, %v2482
    %v2484 = vrot.slane %v2483, 1
    %v2485 = vadd.f32 %v2483, %v2484
    %v2486 = vadd.f32 %v2342, %v2350
    %v2487 = vrot.slane %v2486, 4
    %v2488 = vadd.f32 %v2486, %v2487
    %v2489 = vrot.slane %v2488, 2
    %v2490 = vadd.f32 %v2488, %v2489
    %v2491 = vrot.slane %v2490, 1
    %v2492 = vadd.f32 %v2490, %v2491
    %v2493 = vadd.f32 %v2343, %v2351
    %v2494 = vrot.slane %v2493, 4
    %v2495 = vadd.f32 %v2493, %v2494
    %v2496 = vrot.slane %v2495, 2
    %v2497 = vadd.f32 %v2495, %v2496
    %v2498 = vrot.slane %v2497, 1
    %v2499 = vadd.f32 %v2497, %v2498
    %v2500 = vadd.f32 %v2344, %v2352
    %v2501 = vrot.slane %v2500, 4
    %v2502 = vadd.f32 %v2500, %v2501
    %v2503 = vrot.slane %v2502, 2
    %v2504 = vadd.f32 %v2502, %v2503
    %v2505 = vrot.slane %v2504, 1
    %v2506 = vadd.f32 %v2504, %v2505
    %v2507 = vadd.f32 %v2345, %v2353
    %v2508 = vrot.slane %v2507, 4
    %v2509 = vadd.f32 %v2507, %v2508
    %v2510 = vrot.slane %v2509, 2
    %v2511 = vadd.f32 %v2509, %v2510
    %v2512 = vrot.slane %v2511, 1
    %v2513 = vadd.f32 %v2511, %v2512
    %v2514 = vadd.f32 %v2346, %v2354
    %v2515 = vrot.slane %v2514, 4
    %v2516 = vadd.f32 %v2514, %v2515
    %v2517 = vrot.slane %v2516, 2
    %v2518 = vadd.f32 %v2516, %v2517
    %v2519 = vrot.slane %v2518, 1
    %v2520 = vadd.f32 %v2518, %v2519
    %v2521 = vadd.f32 %v2347, %v2355
    %v2522 = vrot.slane %v2521, 4
    %v2523 = vadd.f32 %v2521, %v2522
    %v2524 = vrot.slane %v2523, 2
    %v2525 = vadd.f32 %v2523, %v2524
    %v2526 = vrot.slane %v2525, 1
    %v2527 = vadd.f32 %v2525, %v2526
    %v2528 = vadd.f32 %v2348, %v2356
    %v2529 = vrot.slane %v2528, 4
    %v2530 = vadd.f32 %v2528, %v2529
    %v2531 = vrot.slane %v2530, 2
    %v2532 = vadd.f32 %v2530, %v2531
    %v2533 = vrot.slane %v2532, 1
    %v2534 = vadd.f32 %v2532, %v2533
    %v2535 = vadd.f32 %v2349, %v2357
    %v2536 = vrot.slane %v2535, 4
    %v2537 = vadd.f32 %v2535, %v2536
    %v2538 = vrot.slane %v2537, 2
    %v2539 = vadd.f32 %v2537, %v2538
    %v2540 = vrot.slane %v2539, 1
    %v2541 = vadd.f32 %v2539, %v2540
    %v2542 = vadd.f32 %v2358, %v2366
    %v2543 = vrot.slane %v2542, 4
    %v2544 = vadd.f32 %v2542, %v2543
    %v2545 = vrot.slane %v2544, 2
    %v2546 = vadd.f32 %v2544, %v2545
    %v2547 = vrot.slane %v2546, 1
    %v2548 = vadd.f32 %v2546, %v2547
    %v2549 = vadd.f32 %v2359, %v2367
    %v2550 = vrot.slane %v2549, 4
    %v2551 = vadd.f32 %v2549, %v2550
    %v2552 = vrot.slane %v2551, 2
    %v2553 = vadd.f32 %v2551, %v2552
    %v2554 = vrot.slane %v2553, 1
    %v2555 = vadd.f32 %v2553, %v2554
    %v2556 = vadd.f32 %v2360, %v2368
    %v2557 = vrot.slane %v2556, 4
    %v2558 = vadd.f32 %v2556, %v2557
    %v2559 = vrot.slane %v2558, 2
    %v2560 = vadd.f32 %v2558, %v2559
    %v2561 = vrot.slane %v2560, 1
    %v2562 = vadd.f32 %v2560, %v2561
    %v2563 = vadd.f32 %v2361, %v2369
    %v2564 = vrot.slane %v2563, 4
    %v2565 = vadd.f32 %v2563, %v2564
    %v2566 = vrot.slane %v2565, 2
    %v2567 = vadd.f32 %v2565, %v2566
    %v2568 = vrot.slane %v2567, 1
    %v2569 = vadd.f32 %v2567, %v2568
    %v2570 = vadd.f32 %v2362, %v2370
    %v2571 = vrot.slane %v2570, 4
    %v2572 = vadd.f32 %v2570, %v2571
    %v2573 = vrot.slane %v2572, 2
    %v2574 = vadd.f32 %v2572, %v2573
    %v2575 = vrot.slane %v2574, 1
    %v2576 = vadd.f32 %v2574, %v2575
    %v2577 = vadd.f32 %v2363, %v2371
    %v2578 = vrot.slane %v2577, 4
    %v2579 = vadd.f32 %v2577, %v2578
    %v2580 = vrot.slane %v2579, 2
    %v2581 = vadd.f32 %v2579, %v2580
    %v2582 = vrot.slane %v2581, 1
    %v2583 = vadd.f32 %v2581, %v2582
    %v2584 = vadd.f32 %v2364, %v2372
    %v2585 = vrot.slane %v2584, 4
    %v2586 = vadd.f32 %v2584, %v2585
    %v2587 = vrot.slane %v2586, 2
    %v2588 = vadd.f32 %v2586, %v2587
    %v2589 = vrot.slane %v2588, 1
    %v2590 = vadd.f32 %v2588, %v2589
    %v2591 = vadd.f32 %v2365, %v2373
    %v2592 = vrot.slane %v2591, 4
    %v2593 = vadd.f32 %v2591, %v2592
    %v2594 = vrot.slane %v2593, 2
    %v2595 = vadd.f32 %v2593, %v2594
    %v2596 = vrot.slane %v2595, 1
    %v2597 = vadd.f32 %v2595, %v2596
    %v2598 = vsub.f32 %v1531, %v1896
    %v2599 = vsub.f32 %v1532, %v1903
    %v2600 = vsub.f32 %v1533, %v1910
    %v2601 = vsub.f32 %v1534, %v1917
    %v2602 = vsub.f32 %v1535, %v1924
    %v2603 = vsub.f32 %v1536, %v1931
    %v2604 = vsub.f32 %v1537, %v1938
    %v2605 = vsub.f32 %v1538, %v1945
    %v2606 = vsub.f32 %v1539, %v1952
    %v2607 = vsub.f32 %v1540, %v1959
    %v2608 = vsub.f32 %v1541, %v1966
    %v2609 = vsub.f32 %v1542, %v1973
    %v2610 = vsub.f32 %v1543, %v1980
    %v2611 = vsub.f32 %v1544, %v1987
    %v2612 = vsub.f32 %v1545, %v1994
    %v2613 = vsub.f32 %v1546, %v2001
    %v2614 = vsub.f32 %v1547, %v2008
    %v2615 = vsub.f32 %v1548, %v2015
    %v2616 = vsub.f32 %v1549, %v2022
    %v2617 = vsub.f32 %v1550, %v2029
    %v2618 = vsub.f32 %v1551, %v2036
    %v2619 = vsub.f32 %v1552, %v2043
    %v2620 = vsub.f32 %v1553, %v2050
    %v2621 = vsub.f32 %v1554, %v2057
    %v2622 = vsub.f32 %v1555, %v2064
    %v2623 = vsub.f32 %v1556, %v2071
    %v2624 = vsub.f32 %v1557, %v2078
    %v2625 = vsub.f32 %v1558, %v2085
    %v2626 = vsub.f32 %v1559, %v2092
    %v2627 = vsub.f32 %v1560, %v2099
    %v2628 = vsub.f32 %v1561, %v2106
    %v2629 = vsub.f32 %v1562, %v2113
    %v2638 = vrot.slane %v739, 1
    %v2639 = vrot.slane %v740, 1
    %v2640 = vrot.slane %v741, 1
    %v2641 = vrot.slane %v742, 1
    %v2642 = vrot.slane %v743, 1
    %v2643 = vrot.slane %v744, 1
    %v2644 = vrot.slane %v745, 1
    %v2645 = vrot.slane %v746, 1
    %v2646 = vrot.slane %v739, 2
    %v2647 = vrot.slane %v740, 2
    %v2648 = vrot.slane %v741, 2
    %v2649 = vrot.slane %v742, 2
    %v2650 = vrot.slane %v743, 2
    %v2651 = vrot.slane %v744, 2
    %v2652 = vrot.slane %v745, 2
    %v2653 = vrot.slane %v746, 2
    %v2654 = vrot.slane %v739, 3
    %v2655 = vrot.slane %v740, 3
    %v2656 = vrot.slane %v741, 3
    %v2657 = vrot.slane %v742, 3
    %v2658 = vrot.slane %v743, 3
    %v2659 = vrot.slane %v744, 3
    %v2660 = vrot.slane %v745, 3
    %v2661 = vrot.slane %v746, 3
    %v2694 = vmul.f32 %v2598, %v739
    %v2695 = vmul.f32 %v2599, %v740
    %v2696 = vmul.f32 %v2600, %v741
    %v2697 = vmul.f32 %v2601, %v742
    %v2698 = vmul.f32 %v2602, %v743
    %v2699 = vmul.f32 %v2603, %v744
    %v2700 = vmul.f32 %v2604, %v745
    %v2701 = vmul.f32 %v2605, %v746
    %v2702 = vmul.f32 %v2606, %v2638
    %v2703 = vmul.f32 %v2607, %v2639
    %v2704 = vmul.f32 %v2608, %v2640
    %v2705 = vmul.f32 %v2609, %v2641
    %v2706 = vmul.f32 %v2610, %v2642
    %v2707 = vmul.f32 %v2611, %v2643
    %v2708 = vmul.f32 %v2612, %v2644
    %v2709 = vmul.f32 %v2613, %v2645
    %v2710 = vmul.f32 %v2614, %v2646
    %v2711 = vmul.f32 %v2615, %v2647
    %v2712 = vmul.f32 %v2616, %v2648
    %v2713 = vmul.f32 %v2617, %v2649
    %v2714 = vmul.f32 %v2618, %v2650
    %v2715 = vmul.f32 %v2619, %v2651
    %v2716 = vmul.f32 %v2620, %v2652
    %v2717 = vmul.f32 %v2621, %v2653
    %v2718 = vmul.f32 %v2622, %v2654
    %v2719 = vmul.f32 %v2623, %v2655
    %v2720 = vmul.f32 %v2624, %v2656
    %v2721 = vmul.f32 %v2625, %v2657
    %v2722 = vmul.f32 %v2626, %v2658
    %v2723 = vmul.f32 %v2627, %v2659
    %v2724 = vmul.f32 %v2628, %v2660
    %v2725 = vmul.f32 %v2629, %v2661
    %v2726 = vsub.f32 %v1531, %v2380
    %v2727 = vsub.f32 %v1532, %v2387
    %v2728 = vsub.f32 %v1533, %v2394
    %v2729 = vsub.f32 %v1534, %v2401
    %v2730 = vsub.f32 %v1535, %v2408
    %v2731 = vsub.f32 %v1536, %v2415
    %v2732 = vsub.f32 %v1537, %v2422
    %v2733 = vsub.f32 %v1538, %v2429
    %v2734 = vsub.f32 %v1539, %v2436
    %v2735 = vsub.f32 %v1540, %v2443
    %v2736 = vsub.f32 %v1541, %v2450
    %v2737 = vsub.f32 %v1542, %v2457
    %v2738 = vsub.f32 %v1543, %v2464
    %v2739 = vsub.f32 %v1544, %v2471
    %v2740 = vsub.f32 %v1545, %v2478
    %v2741 = vsub.f32 %v1546, %v2485
    %v2742 = vsub.f32 %v1547, %v2492
    %v2743 = vsub.f32 %v1548, %v2499
    %v2744 = vsub.f32 %v1549, %v2506
    %v2745 = vsub.f32 %v1550, %v2513
    %v2746 = vsub.f32 %v1551, %v2520
    %v2747 = vsub.f32 %v1552, %v2527
    %v2748 = vsub.f32 %v1553, %v2534
    %v2749 = vsub.f32 %v1554, %v2541
    %v2750 = vsub.f32 %v1555, %v2548
    %v2751 = vsub.f32 %v1556, %v2555
    %v2752 = vsub.f32 %v1557, %v2562
    %v2753 = vsub.f32 %v1558, %v2569
    %v2754 = vsub.f32 %v1559, %v2576
    %v2755 = vsub.f32 %v1560, %v2583
    %v2756 = vsub.f32 %v1561, %v2590
    %v2757 = vsub.f32 %v1562, %v2597
    %v2766 = vrot.slane %v747, 1
    %v2767 = vrot.slane %v748, 1
    %v2768 = vrot.slane %v749, 1
    %v2769 = vrot.slane %v750, 1
    %v2770 = vrot.slane %v751, 1
    %v2771 = vrot.slane %v752, 1
    %v2772 = vrot.slane %v753, 1
    %v2773 = vrot.slane %v754, 1
    %v2774 = vrot.slane %v747, 2
    %v2775 = vrot.slane %v748, 2
    %v2776 = vrot.slane %v749, 2
    %v2777 = vrot.slane %v750, 2
    %v2778 = vrot.slane %v751, 2
    %v2779 = vrot.slane %v752, 2
    %v2780 = vrot.slane %v753, 2
    %v2781 = vrot.slane %v754, 2
    %v2782 = vrot.slane %v747, 3
    %v2783 = vrot.slane %v748, 3
    %v2784 = vrot.slane %v749, 3
    %v2785 = vrot.slane %v750, 3
    %v2786 = vrot.slane %v751, 3
    %v2787 = vrot.slane %v752, 3
    %v2788 = vrot.slane %v753, 3
    %v2789 = vrot.slane %v754, 3
    %v2822 = vmul.f32 %v2726, %v747
    %v2823 = vmul.f32 %v2727, %v748
    %v2824 = vmul.f32 %v2728, %v749
    %v2825 = vmul.f32 %v2729, %v750
    %v2826 = vmul.f32 %v2730, %v751
    %v2827 = vmul.f32 %v2731, %v752
    %v2828 = vmul.f32 %v2732, %v753
    %v2829 = vmul.f32 %v2733, %v754
    %v2830 = vmul.f32 %v2734, %v2766
    %v2831 = vmul.f32 %v2735, %v2767
    %v2832 = vmul.f32 %v2736, %v2768
    %v2833 = vmul.f32 %v2737, %v2769
    %v2834 = vmul.f32 %v2738, %v2770
    %v2835 = vmul.f32 %v2739, %v2771
    %v2836 = vmul.f32 %v2740, %v2772
    %v2837 = vmul.f32 %v2741, %v2773
    %v2838 = vmul.f32 %v2742, %v2774
    %v2839 = vmul.f32 %v2743, %v2775
    %v2840 = vmul.f32 %v2744, %v2776
    %v2841 = vmul.f32 %v2745, %v2777
    %v2842 = vmul.f32 %v2746, %v2778
    %v2843 = vmul.f32 %v2747, %v2779
    %v2844 = vmul.f32 %v2748, %v2780
    %v2845 = vmul.f32 %v2749, %v2781
    %v2846 = vmul.f32 %v2750, %v2782
    %v2847 = vmul.f32 %v2751, %v2783
    %v2848 = vmul.f32 %v2752, %v2784
    %v2849 = vmul.f32 %v2753, %v2785
    %v2850 = vmul.f32 %v2754, %v2786
    %v2851 = vmul.f32 %v2755, %v2787
    %v2852 = vmul.f32 %v2756, %v2788
    %v2853 = vmul.f32 %v2757, %v2789
    %v2854 = vadd.f32 %v2694, %v2822
    %v2855 = vadd.f32 %v2695, %v2823
    %v2856 = vadd.f32 %v2696, %v2824
    %v2857 = vadd.f32 %v2697, %v2825
    %v2858 = vadd.f32 %v2698, %v2826
    %v2859 = vadd.f32 %v2699, %v2827
    %v2860 = vadd.f32 %v2700, %v2828
    %v2861 = vadd.f32 %v2701, %v2829
    %v2862 = vadd.f32 %v2702, %v2830
    %v2863 = vadd.f32 %v2703, %v2831
    %v2864 = vadd.f32 %v2704, %v2832
    %v2865 = vadd.f32 %v2705, %v2833
    %v2866 = vadd.f32 %v2706, %v2834
    %v2867 = vadd.f32 %v2707, %v2835
    %v2868 = vadd.f32 %v2708, %v2836
    %v2869 = vadd.f32 %v2709, %v2837
    %v2870 = vadd.f32 %v2710, %v2838
    %v2871 = vadd.f32 %v2711, %v2839
    %v2872 = vadd.f32 %v2712, %v2840
    %v2873 = vadd.f32 %v2713, %v2841
    %v2874 = vadd.f32 %v2714, %v2842
    %v2875 = vadd.f32 %v2715, %v2843
    %v2876 = vadd.f32 %v2716, %v2844
    %v2877 = vadd.f32 %v2717, %v2845
    %v2878 = vadd.f32 %v2718, %v2846
    %v2879 = vadd.f32 %v2719, %v2847
    %v2880 = vadd.f32 %v2720, %v2848
    %v2881 = vadd.f32 %v2721, %v2849
    %v2882 = vadd.f32 %v2722, %v2850
    %v2883 = vadd.f32 %v2723, %v2851
    %v2884 = vadd.f32 %v2724, %v2852
    %v2885 = vadd.f32 %v2725, %v2853
    %v2918 = vrot.slane %v2862, 7
    %vm2919 = vcmask 1041409
    %v2920 = vsel %vm2919, %v2918, %v2854
    %v2921 = vrot.slane %v2870, 6
    %vm2922 = vcmask 1042434
    %v2923 = vsel %vm2922, %v2921, %v2920
    %v2924 = vrot.slane %v2878, 5
    %vm2925 = vcmask 1043459
    %v2926 = vsel %vm2925, %v2924, %v2923
    %v2927 = vrot.slane %v2863, 7
    %v2928 = vsel %vm2919, %v2927, %v2855
    %v2929 = vrot.slane %v2871, 6
    %v2930 = vsel %vm2922, %v2929, %v2928
    %v2931 = vrot.slane %v2879, 5
    %v2932 = vsel %vm2925, %v2931, %v2930
    %v2933 = vrot.slane %v2864, 7
    %v2934 = vsel %vm2919, %v2933, %v2856
    %v2935 = vrot.slane %v2872, 6
    %v2936 = vsel %vm2922, %v2935, %v2934
    %v2937 = vrot.slane %v2880, 5
    %v2938 = vsel %vm2925, %v2937, %v2936
    %v2939 = vrot.slane %v2865, 7
    %v2940 = vsel %vm2919, %v2939, %v2857
    %v2941 = vrot.slane %v2873, 6
    %v2942 = vsel %vm2922, %v2941, %v2940
    %v2943 = vrot.slane %v2881, 5
    %v2944 = vsel %vm2925, %v2943, %v2942
    %v2945 = vrot.slane %v2866, 7
    %v2946 = vsel %vm2919, %v2945, %v2858
    %v2947 = vrot.slane %v2874, 6
    %v2948 = vsel %vm2922, %v2947, %v2946
    %v2949 = vrot.slane %v2882, 5
    %v2950 = vsel %vm2925, %v2949, %v2948
    %v2951 = vrot.slane %v2867, 7
    %v2952 = vsel %vm2919, %v2951, %v2859
    %v2953 = vrot.slane %v2875, 6
    %v2954 = vsel %vm2922, %v2953, %v2952
    %v2955 = vrot.slane %v2883, 5
    %v2956 = vsel %vm2925, %v2955, %v2954
    %v2957 = vrot.slane %v2868, 7
    %v2958 = vsel %vm2919, %v2957, %v2860
    %v2959 = vrot.slane %v2876, 6
    %v2960 = vsel %vm2922, %v2959, %v2958
    %v2961 = vrot.slane %v2884, 5
    %v2962 = vsel %vm2925, %v2961, %v2960
    %v2963 = vrot.slane %v2869, 7
    %v2964 = vsel %vm2919, %v2963, %v2861
    %v2965 = vrot.slane %v2877, 6
    %v2966 = vsel %vm2922, %v2965, %v2964
    %v2967 = vrot.slane %v2885, 5
    %v2968 = vsel %vm2925, %v2967, %v2966
    %vm2977 = vcmask 1043456
    %v2978 = vsel %vm2977, %v2926, 0.0
    %v2979 = vrot.slane %v2978, 4
    %v2980 = vadd.f32 %v2978, %v2979
    %v2981 = vrot.slane %v2980, 2
    %v2982 = vadd.f32 %v2980, %v2981
    %v2983 = vrot.slane %v2982, 1
    %v2984 = vadd.f32 %v2982, %v2983
    %v2985 = vsel %vm2977, %v2932, 0.0
    %v2986 = vrot.slane %v2985, 4
    %v2987 = vadd.f32 %v2985, %v2986
    %v2988 = vrot.slane %v2987, 2
    %v2989 = vadd.f32 %v2987, %v2988
    %v2990 = vrot.slane %v2989, 1
    %v2991 = vadd.f32 %v2989, %v2990
    %v2992 = vsel %vm2977, %v2938, 0.0
    %v2993 = vrot.slane %v2992, 4
    %v2994 = vadd.f32 %v2992, %v2993
    %v2995 = vrot.slane %v2994, 2
    %v2996 = vadd.f32 %v2994, %v2995
    %v2997 = vrot.slane %v2996, 1
    %v2998 = vadd.f32 %v2996, %v2997
    %v2999 = vsel %vm2977, %v2944, 0.0
    %v3000 = vrot.slane %v2999, 4
    %v3001 = vadd.f32 %v2999, %v3000
    %v3002 = vrot.slane %v3001, 2
    %v3003 = vadd.f32 %v3001, %v3002
    %v3004 = vrot.slane %v3003, 1
    %v3005 = vadd.f32 %v3003, %v3004
    %v3006 = vsel %vm2977, %v2950, 0.0
    %v3007 = vrot.slane %v3006, 4
    %v3008 = vadd.f32 %v3006, %v3007
    %v3009 = vrot.slane %v3008, 2
    %v3010 = vadd.f32 %v3008, %v3009
    %v3011 = vrot.slane %v3010, 1
    %v3012 = vadd.f32 %v3010, %v3011
    %v3013 = vsel %vm2977, %v2956, 0.0
    %v3014 = vrot.slane %v3013, 4
    %v3015 = vadd.f32 %v3013, %v3014
    %v3016 = vrot.slane %v3015, 2
    %v3017 = vadd.f32 %v3015, %v3016
    %v3018 = vrot.slane %v3017, 1
    %v3019 = vadd.f32 %v3017, %v3018
    %v3020 = vsel %vm2977, %v2962, 0.0
    %v3021 = vrot.slane %v3020, 4
    %v3022 = vadd.f32 %v3020, %v3021
    %v3023 = vrot.slane %v3022, 2
    %v3024 = vadd.f32 %v3022, %v3023
    %v3025 = vrot.slane %v3024, 1
    %v3026 = vadd.f32 %v3024, %v3025
    %v3027 = vsel %vm2977, %v2968, 0.0
    %v3028 = vrot.slane %v3027, 4
    %v3029 = vadd.f32 %v3027, %v3028
    %v3030 = vrot.slane %v3029, 2
    %v3031 = vadd.f32 %v3029, %v3030
    %v3032 = vrot.slane %v3031, 1
    %v3033 = vadd.f32 %v3031, %v3032
    %v3034 = vmul.f32 %v2984, 0.25
    %v3035 = vmul.f32 %v2991, 0.25
    %v3036 = vmul.f32 %v2998, 0.25
    %v3037 = vmul.f32 %v3005, 0.25
    %v3038 = vmul.f32 %v3012, 0.25
    %v3039 = vmul.f32 %v3019, 0.25
    %v3040 = vmul.f32 %v3026, 0.25
    %v3041 = vmul.f32 %v3033, 0.25
    %v3042 = vlaneseq
    %v3043 = vshrl.u32 %v3042, 7
    %v3044 = vsub.s32 0, %v3043
    %v3045 = vrot.slane %v93, %v3044
    %v3046 = vlaneseq
    %v3047 = vshrl.u32 %v3046, 7
    %v3048 = vsub.s32 1, %v3047
    %v3049 = vrot.slane %v93, %v3048
    %v3050 = vlaneseq
    %v3051 = vshrl.u32 %v3050, 7
    %v3052 = vsub.s32 2, %v3051
    %v3053 = vrot.slane %v93, %v3052
    %v3054 = vlaneseq
    %v3055 = vshrl.u32 %v3054, 7
    %v3056 = vsub.s32 3, %v3055
    %v3057 = vrot.slane %v93, %v3056
    %v3058 = vlaneseq
    %v3059 = vshrl.u32 %v3058, 7
    %v3060 = vsub.s32 4, %v3059
    %v3061 = vrot.slane %v93, %v3060
    %v3062 = vlaneseq
    %v3063 = vshrl.u32 %v3062, 7
    %v3064 = vsub.s32 5, %v3063
    %v3065 = vrot.slane %v93, %v3064
    %v3066 = vlaneseq
    %v3067 = vshrl.u32 %v3066, 7
    %v3068 = vsub.s32 6, %v3067
    %v3069 = vrot.slane %v93, %v3068
    %v3070 = vlaneseq
    %v3071 = vshrl.u32 %v3070, 7
    %v3072 = vsub.s32 7, %v3071
    %v3073 = vrot.slane %v93, %v3072
    %v3082 = vmul.f32 %v3034, %v3045
    %v3083 = vmul.f32 %v3035, %v3049
    %v3084 = vmul.f32 %v3036, %v3053
    %v3085 = vmul.f32 %v3037, %v3057
    %v3086 = vmul.f32 %v3038, %v3061
    %v3087 = vmul.f32 %v3039, %v3065
    %v3088 = vmul.f32 %v3040, %v3069
    %v3089 = vmul.f32 %v3041, %v3073
    %v3098 = vcombine.low %v3082, %v3083
    %v3099 = vcombine.low %v3084, %v3085
    %v3100 = vcombine.low %v3086, %v3087
    %v3101 = vcombine.low %v3088, %v3089
    %v3103 = vunpack.c.l.s4 1966171168
    %v3104 = vunpack.c.0.s8 %v3103
    %v3105 = vlaneseq
    %v3106 = vshrl.u32 %v3105, 7
    %v3107 = vsub.s32 %v3104, %v3106
    %v3108 = vrot.slane %v3098, %v3107
    %v3110 = vunpack.c.l.s4 1966171168
    %v3111 = vunpack.c.0.s8 %v3110
    %v3112 = vlaneseq
    %v3113 = vshrl.u32 %v3112, 7
    %v3114 = vsub.s32 %v3111, %v3113
    %v3115 = vrot.slane %v3099, %v3114
    %v3117 = vunpack.c.l.s4 1966171168
    %v3118 = vunpack.c.0.s8 %v3117
    %v3119 = vlaneseq
    %v3120 = vshrl.u32 %v3119, 7
    %v3121 = vsub.s32 %v3118, %v3120
    %v3122 = vrot.slane %v3100, %v3121
    %v3124 = vunpack.c.l.s4 1966171168
    %v3125 = vunpack.c.0.s8 %v3124
    %v3126 = vlaneseq
    %v3127 = vshrl.u32 %v3126, 7
    %v3128 = vsub.s32 %v3125, %v3127
    %v3129 = vrot.slane %v3101, %v3128
    %v3130 = vcombine.low %v3108, %v3115
    %v3131 = vcombine.low %v3122, %v3129
    %v3133 = vunpack.c.l.s4 1966171168
    %v3134 = vunpack.c.0.s8 %v3133
    %v3135 = vlaneseq
    %v3136 = vshrl.u32 %v3135, 7
    %v3137 = vsub.s32 %v3134, %v3136
    %v3138 = vrot.slane %v3130, %v3137
    %v3140 = vunpack.c.l.s4 1966171168
    %v3141 = vunpack.c.0.s8 %v3140
    %v3142 = vlaneseq
    %v3143 = vshrl.u32 %v3142, 7
    %v3144 = vsub.s32 %v3141, %v3143
    %v3145 = vrot.slane %v3131, %v3144
    %v3146 = vcombine.low %v3138, %v3145
    %v3148 = vsel %vm475, %v3146, 0.0
    %v3149 = vld [vmem:[#allocation10] sm:$0x1]
    %v3151 = vlaneseq
    %v3152 = vshrl.u32 %v3151, 7
    %v3153 = vsub.s32 0, %v3152
    %v3154 = vrot.slane %v567, %v3153
    %v3155 = vlaneseq
    %v3156 = vshrl.u32 %v3155, 7
    %v3157 = vsub.s32 1, %v3156
    %v3158 = vrot.slane %v567, %v3157
    %v3159 = vlaneseq
    %v3160 = vshrl.u32 %v3159, 7
    %v3161 = vsub.s32 2, %v3160
    %v3162 = vrot.slane %v567, %v3161
    %v3163 = vlaneseq
    %v3164 = vshrl.u32 %v3163, 7
    %v3165 = vsub.s32 3, %v3164
    %v3166 = vrot.slane %v567, %v3165
    %v3167 = vlaneseq
    %v3168 = vshrl.u32 %v3167, 7
    %v3169 = vsub.s32 4, %v3168
    %v3170 = vrot.slane %v567, %v3169
    %v3171 = vlaneseq
    %v3172 = vshrl.u32 %v3171, 7
    %v3173 = vsub.s32 5, %v3172
    %v3174 = vrot.slane %v567, %v3173
    %v3175 = vlaneseq
    %v3176 = vshrl.u32 %v3175, 7
    %v3177 = vsub.s32 6, %v3176
    %v3178 = vrot.slane %v567, %v3177
    %v3179 = vlaneseq
    %v3180 = vshrl.u32 %v3179, 7
    %v3181 = vsub.s32 7, %v3180
    %v3182 = vrot.slane %v567, %v3181
    %vm3191 = vcmask 1040384
    %v3192 = vsel %vm3191, %v3154, 0.0
    %v3193 = vsel %vm3191, %v3158, 0.0
    %v3194 = vadd.f32 %v3192, %v3193
    %v3195 = vsel %vm3191, %v3162, 0.0
    %v3196 = vadd.f32 %v3194, %v3195
    %v3197 = vsel %vm3191, %v3166, 0.0
    %v3198 = vadd.f32 %v3196, %v3197
    %v3199 = vsel %vm3191, %v3170, 0.0
    %v3200 = vadd.f32 %v3198, %v3199
    %v3201 = vsel %vm3191, %v3174, 0.0
    %v3202 = vadd.f32 %v3200, %v3201
    %v3203 = vsel %vm3191, %v3178, 0.0
    %v3204 = vadd.f32 %v3202, %v3203
    %v3205 = vsel %vm3191, %v3182, 0.0
    %v3206 = vadd.f32 %v3204, %v3205
    %3207 = vadd.xlane.f32.xlu0 %v3206
    %v3208 = vpop.xlane.xlu0 %3207
    %v3209 = vadd.f32 %v3149, %v3208
    %vm3210 = vcmask 0
    %3211 = vst.msk [vmem:[#allocation10] sm:$0x1] %vm3210, %v3209
    %v3212 = vld [vmem:[#allocation11] sm:$0x1]
    %v3214 = vlaneseq
    %v3215 = vshrl.u32 %v3214, 7
    %v3216 = vsub.s32 0, %v3215
    %v3217 = vrot.slane %v3148, %v3216
    %v3218 = vlaneseq
    %v3219 = vshrl.u32 %v3218, 7
    %v3220 = vsub.s32 1, %v3219
    %v3221 = vrot.slane %v3148, %v3220
    %v3222 = vlaneseq
    %v3223 = vshrl.u32 %v3222, 7
    %v3224 = vsub.s32 2, %v3223
    %v3225 = vrot.slane %v3148, %v3224
    %v3226 = vlaneseq
    %v3227 = vshrl.u32 %v3226, 7
    %v3228 = vsub.s32 3, %v3227
    %v3229 = vrot.slane %v3148, %v3228
    %v3230 = vlaneseq
    %v3231 = vshrl.u32 %v3230, 7
    %v3232 = vsub.s32 4, %v3231
    %v3233 = vrot.slane %v3148, %v3232
    %v3234 = vlaneseq
    %v3235 = vshrl.u32 %v3234, 7
    %v3236 = vsub.s32 5, %v3235
    %v3237 = vrot.slane %v3148, %v3236
    %v3238 = vlaneseq
    %v3239 = vshrl.u32 %v3238, 7
    %v3240 = vsub.s32 6, %v3239
    %v3241 = vrot.slane %v3148, %v3240
    %v3242 = vlaneseq
    %v3243 = vshrl.u32 %v3242, 7
    %v3244 = vsub.s32 7, %v3243
    %v3245 = vrot.slane %v3148, %v3244
    %v3254 = vsel %vm3191, %v3217, 0.0
    %v3255 = vsel %vm3191, %v3221, 0.0
    %v3256 = vadd.f32 %v3254, %v3255
    %v3257 = vsel %vm3191, %v3225, 0.0
    %v3258 = vadd.f32 %v3256, %v3257
    %v3259 = vsel %vm3191, %v3229, 0.0
    %v3260 = vadd.f32 %v3258, %v3259
    %v3261 = vsel %vm3191, %v3233, 0.0
    %v3262 = vadd.f32 %v3260, %v3261
    %v3263 = vsel %vm3191, %v3237, 0.0
    %v3264 = vadd.f32 %v3262, %v3263
    %v3265 = vsel %vm3191, %v3241, 0.0
    %v3266 = vadd.f32 %v3264, %v3265
    %v3267 = vsel %vm3191, %v3245, 0.0
    %v3268 = vadd.f32 %v3266, %v3267
    %3269 = vadd.xlane.f32.xlu0 %v3268
    %v3270 = vpop.xlane.xlu0 %3269
    %v3271 = vadd.f32 %v3212, %v3270
    %3272 = vst.msk [vmem:[#allocation11] sm:$0x1] %vm3210, %v3271
    // Predicated region
    $region46: #{tpu_custom_call.1} parent=1 // pred_check
      _
    $region47: #{tpu_custom_call.1} parent=1 // pred_check_branch
      %3274 = sbr.rel (0) target = $region49
    $region48: #{tpu_custom_call.1} parent=1 // pred_region
      %s3276 = ssub.s32 16, 16
      %3277 = vsyncadd [#allocation4], %s3276
      %s3279 = sshll.u32 [#allocation10], 4
      %s3280 = int_to_ptr.vmem [resolvable:$true] %s3279
      %3282 = dma.vmem_to_hbm [thread:$0]  %s3280, 16, %s6, [#allocation4]
    $region49: #{tpu_custom_call.1} parent=1 // pred_fallthru
      _
    // Predicated region
    $region50: #{tpu_custom_call.1} parent=1 // pred_check
      _
    $region51: #{tpu_custom_call.1} parent=1 // pred_check_branch
      %3284 = sbr.rel (0) target = $region53
    $region52: #{tpu_custom_call.1} parent=1 // pred_region
      %s3286 = ssub.s32 16, 16
      %3287 = vsyncadd [#allocation12], %s3286
      %s3289 = sshll.u32 [#allocation11], 4
      %s3290 = int_to_ptr.vmem [resolvable:$true] %s3289
      %3292 = dma.vmem_to_hbm [thread:$0]  %s3290, 16, %s7, [#allocation12]
    $region53: #{tpu_custom_call.1} parent=1 // pred_fallthru
      _
    // Predicated region
    $region54: #{tpu_custom_call.1} parent=1 // pred_check
      _
    $region55: #{tpu_custom_call.1} parent=1 // pred_check_branch
      %3294 = sbr.rel (0) target = $region57
    $region56: #{tpu_custom_call.1} parent=1 // pred_region
      %3295 = dma.done [#allocation4], 16
    $region57: #{tpu_custom_call.1} parent=1 // pred_fallthru
      _
    // Predicated region
    $region58: #{tpu_custom_call.1} parent=1 // pred_check
      _
    $region59: #{tpu_custom_call.1} parent=1 // pred_check_branch
      %3297 = sbr.rel (0) target = $region61
    $region60: #{tpu_custom_call.1} parent=1 // pred_region
      %3298 = dma.done [#allocation12], 16
    $region61: #{tpu_custom_call.1} parent=1 // pred_fallthru
      _
    %3299 = vsyncpa [#allocation3], 1
    %3300 = vsyncpa [#allocation6], 1
    %3301 = vsyncpa [#allocation9], 1
    %3302 = vsyncpa [#allocation4], 1
    %3303 = vsyncpa [#allocation12], 1

</llo_original>
